<compile_context>
chip_gen: v5e
topology: v5e:2x2
jax: 0.10.0
libtpu: 0.0.40
codegen_flags: <defaults>
</compile_context>

<pallas_src>
import functools

import jax
import jax.numpy as jnp
from jax import lax
from jax.experimental import pallas as pl
from jax.experimental.pallas import tpu as pltpu

EPS = 1e-5
NUM_STAGES = 4
PAD = 32        # per-stage channel slot (true widths 18..30, zero-padded to 32)


# ----------------------------- Pallas kernel --------------------------------

def _progressive_kernel(x_ref, bn_ref, w2_ref, gl_ref, b_ref, o_ref):
    """Whole arrays resident in VMEM (no grid, no double-buffering).

    x_ref  : (N, C_in)                 activations, row order f*B + b
    bn_ref : (F, NUM_STAGES*4*PAD)     per-frame BN affines [s1|t1|s2|t2]/stage
    w2_ref : (NUM_STAGES, PAD, 2*PAD)  fused [Linear+concat | channel-mix]
    gl_ref : (NUM_STAGES, N, N)        frame-mix kron(gl_w, I_B)
    b_ref  : (NUM_STAGES, 1, 4*PAD)    biases [b_out | b_gpre | gl_b | 0]
    o_ref  : (N, out_channels)
    """
    n, c_in = x_ref.shape
    f = bn_ref.shape[0]
    bsz = n // f
    pad = w2_ref.shape[1]
    num_stages = w2_ref.shape[0]

    # Hoisted batch-broadcast of the compact (F, C) BN affines: one tiny
    # replication matmul (avoids sublane-merging reshapes and (N, C)-tiled
    # parameter traffic).  Uses multiply/compare only (no integer division).
    row_i = lax.broadcasted_iota(jnp.int32, (n, f), 0)
    col_i = lax.broadcasted_iota(jnp.int32, (n, f), 1)
    lo = col_i * bsz
    repl = jnp.where((row_i >= lo) & (row_i < lo + bsz), 1.0, 0.0)      # (N, F)
    bn = jnp.dot(repl, bn_ref[...], preferred_element_type=jnp.float32,
                 precision=lax.Precision.HIGHEST)                 # (N, S*4*PAD)

    # Zero-pad the input channels once up to the uniform per-stage slot width.
    x = jnp.concatenate(
        [x_ref[...], jnp.zeros((n, pad - c_in), jnp.float32)], axis=-1)

    for s in range(num_stages):                                   # fully unrolled
        base = s * 4 * pad
        s1 = bn[:, base            : base + pad]
        t1 = bn[:, base + pad      : base + 2 * pad]
        s2 = bn[:, base + 2 * pad  : base + 3 * pad]
        t2 = bn[:, base + 3 * pad  : base + 4 * pad]
        bias = b_ref[s]                                           # (1, 4*PAD)

        # BatchNorm1d (eval) folded to per-(frame, channel) affine.
        y = x * s1 + t1
        # Linear(up)+concat fused with the graph channel-mix: ONE matmul whose
        # columns are [out | out @ kron(att, I3)].
        og = jnp.dot(y, w2_ref[s],
                     preferred_element_type=jnp.float32) + bias[:, :2 * pad]
        out = og[:, :pad]                                         # concat([y, up])
        # GraphConvolution frame mixing (+ its bias).  kron(gl_w, I_B) matches
        # the f*B+b row order; for large batch use the per-batch (F,F) form or
        # a row-tiled grid instead (see perf review).
        g = jnp.dot(gl_ref[s], og[:, pad:],
                    preferred_element_type=jnp.float32) + bias[:, 2 * pad:3 * pad]
        # BatchNorm1d (eval) + ReLU (Dropout = identity in eval) + residual.
        x = jnp.maximum(g * s2 + t2, 0.0) + out

    o_ref[...] = x[:, :o_ref.shape[1]]


def progressive_pallas(x, slabs, *, out_channels):
    """x: (F, B, C_in) -> (F, B, out_channels). Single fused pallas_call.

    Layout is reshape-only (row order f*B + b): no host transposes.
    """
    F_, B_, C_in = x.shape
    N = F_ * B_
    x2d = x.reshape(N, C_in)                       # free reshape, no transpose
    bn_slab, w2_slab, gl_slab, bias_slab = slabs

    vmem = pl.BlockSpec(memory_space=pltpu.MemorySpace.VMEM)
    out2d = pl.pallas_call(
        _progressive_kernel,
        out_shape=jax.ShapeDtypeStruct((N, out_channels), jnp.float32),
        in_specs=[vmem] * 5,
        out_specs=vmem,
        # NOTE: if N grows, tile rows on a ("parallel",) grid (multiples of 8
        # sublanes) so v7x can use both TensorCores and VMEM stays bounded.
    )(x2d, bn_slab, w2_slab, gl_slab, bias_slab)
    return out2d.reshape(F_, B_, out_channels)     # free reshape


# --------------------- one-time parameter preparation ------------------------

def _pad2(a, rows, cols):
    return jnp.pad(a, ((0, rows - a.shape[0]), (0, cols - a.shape[1])))


def prepare_params(params, batch, frame_num):
    """Fold / pack all 4 stages' parameters into 4 contiguous slabs."""
    hp = lax.Precision.HIGHEST
    bn_cols, w2_blocks, gl_blocks, bias_rows = [], [], [], []
    n_in = params[0]["up_w"].shape[1]
    for p in params:
        n_out = n_in + 3

        def fold(gamma, beta, mean, var, width):
            inv = gamma / jnp.sqrt(var + EPS)
            shift = beta - mean * inv
            return (_pad2(inv.reshape(frame_num, width), frame_num, PAD),
                    _pad2(shift.reshape(frame_num, width), frame_num, PAD))

        s1, t1 = fold(p["bn1_gamma"], p["bn1_beta"], p["bn1_mean"], p["bn1_var"], n_in)
        s2, t2 = fold(p["bn2_gamma"], p["bn2_beta"], p["bn2_mean"], p["bn2_var"], n_out)
        bn_cols += [s1, t1, s2, t2]

        # Linear(up)+concat: out = y @ [I | W_up^T] + [0 | b_up]
        w_cat = jnp.concatenate([jnp.eye(n_in, dtype=jnp.float32), p["up_w"].T], axis=1)
        b_cat = jnp.concatenate([jnp.zeros((n_in,), jnp.float32), p["up_b"]])[None, :]
        # graph channel mix: g_pre = out @ kron(Ap*M + Q, I_3)
        a_exp = jnp.kron(p["Ap"] * p["M"] + p["Q"], jnp.eye(3, dtype=jnp.float32))
        # fuse the two matmuls that share LHS y (review item 1)
        w2 = jnp.concatenate(
            [_pad2(w_cat, PAD, PAD),
             _pad2(jnp.matmul(w_cat, a_exp, precision=hp), PAD, PAD)], axis=1)
        b2 = jnp.concatenate(
            [_pad2(b_cat, 1, PAD),
             _pad2(jnp.matmul(b_cat, a_exp, precision=hp), 1, PAD)], axis=1)
        w2_blocks.append(w2)                                   # (PAD, 2*PAD)

        # frame mixing for row order f*B + b (transpose-free layout).
        gl_blocks.append(jnp.kron(p["gl_w"], jnp.eye(batch, dtype=jnp.float32)))
        bias_rows.append(jnp.concatenate(
            [b2, _pad2(p["gl_b"][None, :], 1, PAD), jnp.zeros((1, PAD), jnp.float32)],
            axis=1))                                           # (1, 4*PAD)
        n_in = n_out

    return (jnp.concatenate(bn_cols, axis=1),    # (F, NUM_STAGES*4*PAD)
            jnp.stack(w2_blocks),                # (NUM_STAGES, PAD, 2*PAD)
            jnp.stack(gl_blocks),                # (NUM_STAGES, B*F, B*F)
            jnp.stack(bias_rows))                # (NUM_STAGES, 1, 4*PAD)


# ------------------------------- init ----------------------------------------

def init_params(key, frame_num, input_size):
    """Matches PyTorch init: xavier_normal Linear (bias 0.1), BN gamma=1/beta=0,
    GraphConvolution reset_parameters (gl_w/gl_b U(-1/sqrt(node),..),
    Q U(0.01,0.24), Ap = M = adj)."""
    params = []
    keys = iter(jax.random.split(key, 5 * NUM_STAGES))
    n_in = input_size
    for _stage in range(NUM_STAGES):
        n_out = n_in + 3
        node = n_out // 3
        p = {}
        for tag, width in (("bn1", n_in), ("bn2", n_out)):
            p[f"{tag}_gamma"] = jnp.ones((frame_num * width,), jnp.float32)
            p[f"{tag}_beta"] = jnp.zeros((frame_num * width,), jnp.float32)
            p[f"{tag}_mean"] = jnp.zeros((frame_num * width,), jnp.float32)
            p[f"{tag}_var"] = jnp.ones((frame_num * width,), jnp.float32)
        std = (2.0 / (n_in + 3)) ** 0.5
        p["up_w"] = std * jax.random.normal(next(keys), (3, n_in), jnp.float32)
        p["up_b"] = jnp.full((3,), 0.1, jnp.float32)
        stdv = 1.0 / (node ** 0.5)
        adj = jax.random.uniform(next(keys), (node, node), jnp.float32, 0.0, 1.0) / node
        p["Ap"] = adj
        p["M"] = adj
        p["Q"] = jax.random.uniform(next(keys), (node, node), jnp.float32, 0.01, 0.24)
        p["gl_w"] = jax.random.uniform(next(keys), (frame_num, frame_num),
                                       jnp.float32, -stdv, stdv)
        p["gl_b"] = jax.random.uniform(next(keys), (n_out,), jnp.float32, -stdv, stdv)
        params.append(p)
        n_in = n_out
    return params


# ------------------------- pure-JAX reference (checks) -----------------------

def _up_reference(x, p):
    F_, B_, n_in = x.shape
    n_out = n_in + 3
    node = n_out // 3
    hp = jax.lax.Precision.HIGHEST
    xb = jnp.transpose(x, (1, 0, 2)).reshape(B_, -1)
    y = (xb - p["bn1_mean"]) / jnp.sqrt(p["bn1_var"] + EPS) * p["bn1_gamma"] + p["bn1_beta"]
    y = jnp.transpose(y.reshape(B_, F_, n_in), (1, 0, 2))
    up = jnp.einsum("fbi,oi->fbo", y, p["up_w"], precision=hp) + p["up_b"]
    output = jnp.concatenate([y, up], axis=2)
    gx = jnp.transpose(output, (1, 0, 2))                         # (B, F, n_out)
    att = p["Ap"] * p["M"] + p["Q"]
    xr = jnp.swapaxes(gx.reshape(B_, F_, node, 3), 2, 3)          # (B, F, 3, node)
    o1 = jnp.einsum("bfdk,kj->bfdj", xr, att, precision=hp)
    o2 = jnp.swapaxes(o1, 2, 3).reshape(B_, F_, n_out)
    o3 = jnp.einsum("ig,bgn->bin", p["gl_w"], o2, precision=hp) + p["gl_b"]
    yb = o3.reshape(B_, -1)
    y2 = (yb - p["bn2_mean"]) / jnp.sqrt(p["bn2_var"] + EPS) * p["bn2_gamma"] + p["bn2_beta"]
    y2 = jnp.transpose(y2.reshape(B_, F_, n_out), (1, 0, 2))
    return jnp.maximum(y2, 0.0) + output


def progressive_reference(x, params):
    for p in params:
        x = _up_reference(x, p)
    return x


# ---------------------------------- main --------------------------------------

if __name__ == "__main__":
    frame_num, batch, input_size = 10, 2, 18     # channels: 18 -> 21 -> 24 -> 27 -> 30
    out_channels = input_size + 3 * NUM_STAGES   # 30

    key = jax.random.PRNGKey(0)
    k_param, k_x = jax.random.split(key)
    params = init_params(k_param, frame_num, input_size)
    x = jax.random.normal(k_x, (frame_num, batch, input_size), jnp.float32)

    # One-time parameter preparation (folding + packing, hoisted out of forward).
    slabs = prepare_params(params, batch, frame_num)

    fwd = jax.jit(functools.partial(progressive_pallas, out_channels=out_channels))
    out = fwd(x, slabs)
    jax.block_until_ready(out)
    assert out.shape == (frame_num, batch, out_channels)

    ref = progressive_reference(x, params)
    assert jnp.allclose(out, ref, rtol=1e-2, atol=1e-2), \
        float(jnp.max(jnp.abs(out - ref)))
    print("KERNEL_OK")
</pallas_src>

<mosaic_0001>
module attributes {stable_mosaic.version = 11 : i64} {
  func.func @_progressive_kernel(%arg0: memref<20x18xf32, #tpu.memory_space<vmem>>, %arg1: memref<10x512xf32, #tpu.memory_space<vmem>>, %arg2: memref<4x32x64xf32, #tpu.memory_space<vmem>>, %arg3: memref<4x20x20xf32, #tpu.memory_space<vmem>>, %arg4: memref<4x1x128xf32, #tpu.memory_space<vmem>>, %arg5: memref<20x30xf32, #tpu.memory_space<vmem>>) attributes {dimension_semantics = [], scalar_prefetch = 0 : i64, scratch_operands = 0 : i64, tpu.core_type = #tpu.core_type<tc>} {
    %0 = tpu.iota {dimensions = array<i32: 0>} : vector<20x10xi32>
    %1 = tpu.iota {dimensions = array<i32: 1>} : vector<20x10xi32>
    %c2_i32 = arith.constant 2 : i32
    %2 = vector.broadcast %c2_i32 : i32 to vector<20x10xi32>
    %3 = arith.muli %1, %2 : vector<20x10xi32>
    %4 = arith.cmpi sge, %0, %3 : vector<20x10xi32>
    %c2_i32_0 = arith.constant 2 : i32
    %5 = vector.broadcast %c2_i32_0 : i32 to vector<20x10xi32>
    %6 = arith.addi %3, %5 : vector<20x10xi32>
    %7 = arith.cmpi slt, %0, %6 : vector<20x10xi32>
    %8 = arith.andi %4, %7 : vector<20x10xi1>
    %cst = arith.constant 1.000000e+00 : f32
    %cst_1 = arith.constant 0.000000e+00 : f32
    %9 = vector.broadcast %cst : f32 to vector<20x10xf32>
    %10 = vector.broadcast %cst_1 : f32 to vector<20x10xf32>
    %11 = arith.select %8, %9, %10 : vector<20x10xi1>, vector<20x10xf32>
    %c0 = arith.constant 0 : index
    %c0_2 = arith.constant 0 : index
    %12 = vector.load %arg1[%c0, %c0_2] : memref<10x512xf32, #tpu.memory_space<vmem>>, vector<10x512xf32>
    %cst_3 = arith.constant dense<0.000000e+00> : vector<20x512xf32>
    %13 = tpu.matmul %11, %12, %cst_3 {dimension_numbers = #tpu.dot_dimension_numbers<[1], [0], [0], [1], [0, 0, 1, 1], [], []>, precision = #tpu.contract_precision<fp32>} : vector<20x10xf32>, vector<10x512xf32>, vector<20x512xf32> -> vector<20x512xf32>
    %c0_4 = arith.constant 0 : index
    %c0_5 = arith.constant 0 : index
    %14 = vector.load %arg0[%c0_4, %c0_5] : memref<20x18xf32, #tpu.memory_space<vmem>>, vector<20x18xf32>
    %cst_6 = arith.constant 0.000000e+00 : f32
    %15 = vector.broadcast %cst_6 : f32 to vector<20x14xf32>
    %16 = tpu.concatenate %14, %15 in 1 : vector<20x18xf32>, vector<20x14xf32> -> vector<20x32xf32>
    %17 = vector.extract_strided_slice %13 {offsets = [0, 0], sizes = [20, 32], strides = [1, 1]} : vector<20x512xf32> to vector<20x32xf32>
    %18 = vector.extract_strided_slice %13 {offsets = [0, 32], sizes = [20, 32], strides = [1, 1]} : vector<20x512xf32> to vector<20x32xf32>
    %19 = vector.extract_strided_slice %13 {offsets = [0, 64], sizes = [20, 32], strides = [1, 1]} : vector<20x512xf32> to vector<20x32xf32>
    %20 = vector.extract_strided_slice %13 {offsets = [0, 96], sizes = [20, 32], strides = [1, 1]} : vector<20x512xf32> to vector<20x32xf32>
    %c0_7 = arith.constant 0 : index
    %c0_8 = arith.constant 0 : index
    %c0_9 = arith.constant 0 : index
    %21 = vector.load %arg4[%c0_7, %c0_8, %c0_9] : memref<4x1x128xf32, #tpu.memory_space<vmem>>, vector<1x1x128xf32>
    %22 = vector.shape_cast %21 : vector<1x1x128xf32> to vector<1x128xf32>
    %23 = arith.mulf %16, %17 : vector<20x32xf32>
    %24 = arith.addf %23, %18 : vector<20x32xf32>
    %c0_10 = arith.constant 0 : index
    %c0_11 = arith.constant 0 : index
    %c0_12 = arith.constant 0 : index
    %25 = vector.load %arg2[%c0_10, %c0_11, %c0_12] : memref<4x32x64xf32, #tpu.memory_space<vmem>>, vector<1x32x64xf32>
    %26 = vector.shape_cast %25 : vector<1x32x64xf32> to vector<32x64xf32>
    %cst_13 = arith.constant dense<0.000000e+00> : vector<20x64xf32>
    %27 = tpu.matmul %24, %26, %cst_13 {dimension_numbers = #tpu.dot_dimension_numbers<[1], [0], [0], [1], [0, 0, 1, 1], [], []>} : vector<20x32xf32>, vector<32x64xf32>, vector<20x64xf32> -> vector<20x64xf32>
    %28 = vector.extract_strided_slice %22 {offsets = [0, 0], sizes = [1, 64], strides = [1, 1]} : vector<1x128xf32> to vector<1x64xf32>
    %29 = vector.broadcast %28 : vector<1x64xf32> to vector<20x64xf32>
    %30 = arith.addf %27, %29 : vector<20x64xf32>
    %31 = vector.extract_strided_slice %30 {offsets = [0, 0], sizes = [20, 32], strides = [1, 1]} : vector<20x64xf32> to vector<20x32xf32>
    %c0_14 = arith.constant 0 : index
    %c0_15 = arith.constant 0 : index
    %c0_16 = arith.constant 0 : index
    %32 = vector.load %arg3[%c0_14, %c0_15, %c0_16] : memref<4x20x20xf32, #tpu.memory_space<vmem>>, vector<1x20x20xf32>
    %33 = vector.shape_cast %32 : vector<1x20x20xf32> to vector<20x20xf32>
    %34 = vector.extract_strided_slice %30 {offsets = [0, 32], sizes = [20, 32], strides = [1, 1]} : vector<20x64xf32> to vector<20x32xf32>
    %cst_17 = arith.constant dense<0.000000e+00> : vector<20x32xf32>
    %35 = tpu.matmul %33, %34, %cst_17 {dimension_numbers = #tpu.dot_dimension_numbers<[1], [0], [0], [1], [0, 0, 1, 1], [], []>} : vector<20x20xf32>, vector<20x32xf32>, vector<20x32xf32> -> vector<20x32xf32>
    %36 = vector.extract_strided_slice %22 {offsets = [0, 64], sizes = [1, 32], strides = [1, 1]} : vector<1x128xf32> to vector<1x32xf32>
    %37 = vector.broadcast %36 : vector<1x32xf32> to vector<20x32xf32>
    %38 = arith.addf %35, %37 : vector<20x32xf32>
    %39 = arith.mulf %38, %19 : vector<20x32xf32>
    %40 = arith.addf %39, %20 : vector<20x32xf32>
    %cst_18 = arith.constant 0.000000e+00 : f32
    %41 = vector.broadcast %cst_18 : f32 to vector<20x32xf32>
    %42 = arith.maximumf %40, %41 : vector<20x32xf32>
    %43 = arith.addf %42, %31 : vector<20x32xf32>
    %44 = vector.extract_strided_slice %13 {offsets = [0, 128], sizes = [20, 32], strides = [1, 1]} : vector<20x512xf32> to vector<20x32xf32>
    %45 = vector.extract_strided_slice %13 {offsets = [0, 160], sizes = [20, 32], strides = [1, 1]} : vector<20x512xf32> to vector<20x32xf32>
    %46 = vector.extract_strided_slice %13 {offsets = [0, 192], sizes = [20, 32], strides = [1, 1]} : vector<20x512xf32> to vector<20x32xf32>
    %47 = vector.extract_strided_slice %13 {offsets = [0, 224], sizes = [20, 32], strides = [1, 1]} : vector<20x512xf32> to vector<20x32xf32>
    %c1 = arith.constant 1 : index
    %c0_19 = arith.constant 0 : index
    %c0_20 = arith.constant 0 : index
    %48 = vector.load %arg4[%c1, %c0_19, %c0_20] : memref<4x1x128xf32, #tpu.memory_space<vmem>>, vector<1x1x128xf32>
    %49 = vector.shape_cast %48 : vector<1x1x128xf32> to vector<1x128xf32>
    %50 = arith.mulf %43, %44 : vector<20x32xf32>
    %51 = arith.addf %50, %45 : vector<20x32xf32>
    %c1_21 = arith.constant 1 : index
    %c0_22 = arith.constant 0 : index
    %c0_23 = arith.constant 0 : index
    %52 = vector.load %arg2[%c1_21, %c0_22, %c0_23] : memref<4x32x64xf32, #tpu.memory_space<vmem>>, vector<1x32x64xf32>
    %53 = vector.shape_cast %52 : vector<1x32x64xf32> to vector<32x64xf32>
    %cst_24 = arith.constant dense<0.000000e+00> : vector<20x64xf32>
    %54 = tpu.matmul %51, %53, %cst_24 {dimension_numbers = #tpu.dot_dimension_numbers<[1], [0], [0], [1], [0, 0, 1, 1], [], []>} : vector<20x32xf32>, vector<32x64xf32>, vector<20x64xf32> -> vector<20x64xf32>
    %55 = vector.extract_strided_slice %49 {offsets = [0, 0], sizes = [1, 64], strides = [1, 1]} : vector<1x128xf32> to vector<1x64xf32>
    %56 = vector.broadcast %55 : vector<1x64xf32> to vector<20x64xf32>
    %57 = arith.addf %54, %56 : vector<20x64xf32>
    %58 = vector.extract_strided_slice %57 {offsets = [0, 0], sizes = [20, 32], strides = [1, 1]} : vector<20x64xf32> to vector<20x32xf32>
    %c1_25 = arith.constant 1 : index
    %c0_26 = arith.constant 0 : index
    %c0_27 = arith.constant 0 : index
    %59 = vector.load %arg3[%c1_25, %c0_26, %c0_27] : memref<4x20x20xf32, #tpu.memory_space<vmem>>, vector<1x20x20xf32>
    %60 = vector.shape_cast %59 : vector<1x20x20xf32> to vector<20x20xf32>
    %61 = vector.extract_strided_slice %57 {offsets = [0, 32], sizes = [20, 32], strides = [1, 1]} : vector<20x64xf32> to vector<20x32xf32>
    %cst_28 = arith.constant dense<0.000000e+00> : vector<20x32xf32>
    %62 = tpu.matmul %60, %61, %cst_28 {dimension_numbers = #tpu.dot_dimension_numbers<[1], [0], [0], [1], [0, 0, 1, 1], [], []>} : vector<20x20xf32>, vector<20x32xf32>, vector<20x32xf32> -> vector<20x32xf32>
    %63 = vector.extract_strided_slice %49 {offsets = [0, 64], sizes = [1, 32], strides = [1, 1]} : vector<1x128xf32> to vector<1x32xf32>
    %64 = vector.broadcast %63 : vector<1x32xf32> to vector<20x32xf32>
    %65 = arith.addf %62, %64 : vector<20x32xf32>
    %66 = arith.mulf %65, %46 : vector<20x32xf32>
    %67 = arith.addf %66, %47 : vector<20x32xf32>
    %cst_29 = arith.constant 0.000000e+00 : f32
    %68 = vector.broadcast %cst_29 : f32 to vector<20x32xf32>
    %69 = arith.maximumf %67, %68 : vector<20x32xf32>
    %70 = arith.addf %69, %58 : vector<20x32xf32>
    %71 = vector.extract_strided_slice %13 {offsets = [0, 256], sizes = [20, 32], strides = [1, 1]} : vector<20x512xf32> to vector<20x32xf32>
    %72 = vector.extract_strided_slice %13 {offsets = [0, 288], sizes = [20, 32], strides = [1, 1]} : vector<20x512xf32> to vector<20x32xf32>
    %73 = vector.extract_strided_slice %13 {offsets = [0, 320], sizes = [20, 32], strides = [1, 1]} : vector<20x512xf32> to vector<20x32xf32>
    %74 = vector.extract_strided_slice %13 {offsets = [0, 352], sizes = [20, 32], strides = [1, 1]} : vector<20x512xf32> to vector<20x32xf32>
    %c2 = arith.constant 2 : index
    %c0_30 = arith.constant 0 : index
    %c0_31 = arith.constant 0 : index
    %75 = vector.load %arg4[%c2, %c0_30, %c0_31] : memref<4x1x128xf32, #tpu.memory_space<vmem>>, vector<1x1x128xf32>
    %76 = vector.shape_cast %75 : vector<1x1x128xf32> to vector<1x128xf32>
    %77 = arith.mulf %70, %71 : vector<20x32xf32>
    %78 = arith.addf %77, %72 : vector<20x32xf32>
    %c2_32 = arith.constant 2 : index
    %c0_33 = arith.constant 0 : index
    %c0_34 = arith.constant 0 : index
    %79 = vector.load %arg2[%c2_32, %c0_33, %c0_34] : memref<4x32x64xf32, #tpu.memory_space<vmem>>, vector<1x32x64xf32>
    %80 = vector.shape_cast %79 : vector<1x32x64xf32> to vector<32x64xf32>
    %cst_35 = arith.constant dense<0.000000e+00> : vector<20x64xf32>
    %81 = tpu.matmul %78, %80, %cst_35 {dimension_numbers = #tpu.dot_dimension_numbers<[1], [0], [0], [1], [0, 0, 1, 1], [], []>} : vector<20x32xf32>, vector<32x64xf32>, vector<20x64xf32> -> vector<20x64xf32>
    %82 = vector.extract_strided_slice %76 {offsets = [0, 0], sizes = [1, 64], strides = [1, 1]} : vector<1x128xf32> to vector<1x64xf32>
    %83 = vector.broadcast %82 : vector<1x64xf32> to vector<20x64xf32>
    %84 = arith.addf %81, %83 : vector<20x64xf32>
    %85 = vector.extract_strided_slice %84 {offsets = [0, 0], sizes = [20, 32], strides = [1, 1]} : vector<20x64xf32> to vector<20x32xf32>
    %c2_36 = arith.constant 2 : index
    %c0_37 = arith.constant 0 : index
    %c0_38 = arith.constant 0 : index
    %86 = vector.load %arg3[%c2_36, %c0_37, %c0_38] : memref<4x20x20xf32, #tpu.memory_space<vmem>>, vector<1x20x20xf32>
    %87 = vector.shape_cast %86 : vector<1x20x20xf32> to vector<20x20xf32>
    %88 = vector.extract_strided_slice %84 {offsets = [0, 32], sizes = [20, 32], strides = [1, 1]} : vector<20x64xf32> to vector<20x32xf32>
    %cst_39 = arith.constant dense<0.000000e+00> : vector<20x32xf32>
    %89 = tpu.matmul %87, %88, %cst_39 {dimension_numbers = #tpu.dot_dimension_numbers<[1], [0], [0], [1], [0, 0, 1, 1], [], []>} : vector<20x20xf32>, vector<20x32xf32>, vector<20x32xf32> -> vector<20x32xf32>
    %90 = vector.extract_strided_slice %76 {offsets = [0, 64], sizes = [1, 32], strides = [1, 1]} : vector<1x128xf32> to vector<1x32xf32>
    %91 = vector.broadcast %90 : vector<1x32xf32> to vector<20x32xf32>
    %92 = arith.addf %89, %91 : vector<20x32xf32>
    %93 = arith.mulf %92, %73 : vector<20x32xf32>
    %94 = arith.addf %93, %74 : vector<20x32xf32>
    %cst_40 = arith.constant 0.000000e+00 : f32
    %95 = vector.broadcast %cst_40 : f32 to vector<20x32xf32>
    %96 = arith.maximumf %94, %95 : vector<20x32xf32>
    %97 = arith.addf %96, %85 : vector<20x32xf32>
    %98 = vector.extract_strided_slice %13 {offsets = [0, 384], sizes = [20, 32], strides = [1, 1]} : vector<20x512xf32> to vector<20x32xf32>
    %99 = vector.extract_strided_slice %13 {offsets = [0, 416], sizes = [20, 32], strides = [1, 1]} : vector<20x512xf32> to vector<20x32xf32>
    %100 = vector.extract_strided_slice %13 {offsets = [0, 448], sizes = [20, 32], strides = [1, 1]} : vector<20x512xf32> to vector<20x32xf32>
    %101 = vector.extract_strided_slice %13 {offsets = [0, 480], sizes = [20, 32], strides = [1, 1]} : vector<20x512xf32> to vector<20x32xf32>
    %c3 = arith.constant 3 : index
    %c0_41 = arith.constant 0 : index
    %c0_42 = arith.constant 0 : index
    %102 = vector.load %arg4[%c3, %c0_41, %c0_42] : memref<4x1x128xf32, #tpu.memory_space<vmem>>, vector<1x1x128xf32>
    %103 = vector.shape_cast %102 : vector<1x1x128xf32> to vector<1x128xf32>
    %104 = arith.mulf %97, %98 : vector<20x32xf32>
    %105 = arith.addf %104, %99 : vector<20x32xf32>
    %c3_43 = arith.constant 3 : index
    %c0_44 = arith.constant 0 : index
    %c0_45 = arith.constant 0 : index
    %106 = vector.load %arg2[%c3_43, %c0_44, %c0_45] : memref<4x32x64xf32, #tpu.memory_space<vmem>>, vector<1x32x64xf32>
    %107 = vector.shape_cast %106 : vector<1x32x64xf32> to vector<32x64xf32>
    %cst_46 = arith.constant dense<0.000000e+00> : vector<20x64xf32>
    %108 = tpu.matmul %105, %107, %cst_46 {dimension_numbers = #tpu.dot_dimension_numbers<[1], [0], [0], [1], [0, 0, 1, 1], [], []>} : vector<20x32xf32>, vector<32x64xf32>, vector<20x64xf32> -> vector<20x64xf32>
    %109 = vector.extract_strided_slice %103 {offsets = [0, 0], sizes = [1, 64], strides = [1, 1]} : vector<1x128xf32> to vector<1x64xf32>
    %110 = vector.broadcast %109 : vector<1x64xf32> to vector<20x64xf32>
    %111 = arith.addf %108, %110 : vector<20x64xf32>
    %112 = vector.extract_strided_slice %111 {offsets = [0, 0], sizes = [20, 32], strides = [1, 1]} : vector<20x64xf32> to vector<20x32xf32>
    %c3_47 = arith.constant 3 : index
    %c0_48 = arith.constant 0 : index
    %c0_49 = arith.constant 0 : index
    %113 = vector.load %arg3[%c3_47, %c0_48, %c0_49] : memref<4x20x20xf32, #tpu.memory_space<vmem>>, vector<1x20x20xf32>
    %114 = vector.shape_cast %113 : vector<1x20x20xf32> to vector<20x20xf32>
    %115 = vector.extract_strided_slice %111 {offsets = [0, 32], sizes = [20, 32], strides = [1, 1]} : vector<20x64xf32> to vector<20x32xf32>
    %cst_50 = arith.constant dense<0.000000e+00> : vector<20x32xf32>
    %116 = tpu.matmul %114, %115, %cst_50 {dimension_numbers = #tpu.dot_dimension_numbers<[1], [0], [0], [1], [0, 0, 1, 1], [], []>} : vector<20x20xf32>, vector<20x32xf32>, vector<20x32xf32> -> vector<20x32xf32>
    %117 = vector.extract_strided_slice %103 {offsets = [0, 64], sizes = [1, 32], strides = [1, 1]} : vector<1x128xf32> to vector<1x32xf32>
    %118 = vector.broadcast %117 : vector<1x32xf32> to vector<20x32xf32>
    %119 = arith.addf %116, %118 : vector<20x32xf32>
    %120 = arith.mulf %119, %100 : vector<20x32xf32>
    %121 = arith.addf %120, %101 : vector<20x32xf32>
    %cst_51 = arith.constant 0.000000e+00 : f32
    %122 = vector.broadcast %cst_51 : f32 to vector<20x32xf32>
    %123 = arith.maximumf %121, %122 : vector<20x32xf32>
    %124 = arith.addf %123, %112 : vector<20x32xf32>
    %125 = vector.extract_strided_slice %124 {offsets = [0, 0], sizes = [20, 30], strides = [1, 1]} : vector<20x32xf32> to vector<20x30xf32>
    %c0_52 = arith.constant 0 : index
    %c0_53 = arith.constant 0 : index
    %126 = vector.load %arg5[%c0_52, %c0_53] : memref<20x30xf32, #tpu.memory_space<vmem>>, vector<20x30xf32>
    tpu.vector_store %arg5[%c0_52, %c0_53], %125 {strides = array<i32>} : memref<20x30xf32, #tpu.memory_space<vmem>>, vector<20x30xf32>,
    return
  }
}

</mosaic_0001>

<llo_original>
// kernel: progressive_pallas.1
$region0: #{progressive_pallas.1}
  #allocation0 [shape = 'u32[]', space=smem, size = 0x4, offset = 0x4, fixed_abs, tag = 'smem constant byte address 0x4 - core index']
  #allocation1 [shape = 'u32[72,128]{1,0:T(1,128)}', space=vmem, size = 0x9000, scoped, tag = 'internal scratch']
  %s0 = inlined_call_operand.vmem [shape: f32[20,18], index: 0, kind: input, shape index: {}]
  %s1 = inlined_call_operand.vmem [shape: f32[10,512], index: 1, kind: input, shape index: {}]
  %s2 = inlined_call_operand.vmem [shape: f32[4,32,64], index: 2, kind: input, shape index: {}]
  %s3 = inlined_call_operand.vmem [shape: f32[4,20,20], index: 3, kind: input, shape index: {}]
  %s4 = inlined_call_operand.vmem [shape: f32[4,1,128], index: 4, kind: input, shape index: {}]
  %s5 = inlined_call_operand.vmem [shape: f32[20,30], index: 5, kind: output, shape index: {}]
  %s6 = sld [smem:[#allocation0]]
  $region30: #{progressive_pallas.1} parent=0
    _
  %s8 = ssub.s32 1, %s6
  %s9 = scalar_select 0, %s8, %s6
  // Predicated region
  $region2: #{progressive_pallas.1} parent=0 // pred_check
    _
  $region3: #{progressive_pallas.1} parent=0 // pred_check_branch
    %11 = sbr.rel (0) target = $region5
  $region4: #{progressive_pallas.1} parent=0 // pred_region
    _
  $region5: #{progressive_pallas.1} parent=0 // pred_fallthru
    _
  // Predicated region
  $region6: #{progressive_pallas.1} parent=0 // pred_check
    _
  $region7: #{progressive_pallas.1} parent=0 // pred_check_branch
    %13 = sbr.rel (0) target = $region9
  $region8: #{progressive_pallas.1} parent=0 // pred_region
    _
  $region9: #{progressive_pallas.1} parent=0 // pred_fallthru
    _
  // Predicated region
  $region10: #{progressive_pallas.1} parent=0 // pred_check
    _
  $region11: #{progressive_pallas.1} parent=0 // pred_check_branch
    %15 = sbr.rel (0) target = $region13
  $region12: #{progressive_pallas.1} parent=0 // pred_region
    _
  $region13: #{progressive_pallas.1} parent=0 // pred_fallthru
    _
  // Predicated region
  $region14: #{progressive_pallas.1} parent=0 // pred_check
    _
  $region15: #{progressive_pallas.1} parent=0 // pred_check_branch
    %17 = sbr.rel (0) target = $region17
  $region16: #{progressive_pallas.1} parent=0 // pred_region
    _
  $region17: #{progressive_pallas.1} parent=0 // pred_fallthru
    _
  // Predicated region
  $region18: #{progressive_pallas.1} parent=0 // pred_check
    _
  $region19: #{progressive_pallas.1} parent=0 // pred_check_branch
    %19 = sbr.rel (0) target = $region21
  $region20: #{progressive_pallas.1} parent=0 // pred_region
    _
  $region21: #{progressive_pallas.1} parent=0 // pred_fallthru
    _
  %v20 = vlaneseq
  %v21 = vshrl.u32 %v20, 7
  %v22 = vadd.s32 %v21, 8
  %v23 = vadd.s32 %v21, 16
  %v24 = vlaneseq
  %v25 = vand.u32 %v24, 127
  %v26 = vmul.u32 %v25, 2
  %vm27 = vcmp.ge.s32.totalorder %v21, %v26
  %vm28 = vcmp.ge.s32.totalorder %v22, %v26
  %vm29 = vcmp.ge.s32.totalorder %v23, %v26
  %v30 = vadd.s32 %v26, 2
  %vm31 = vcmp.lt.s32.totalorder %v21, %v30
  %vm32 = vcmp.lt.s32.totalorder %v22, %v30
  %vm33 = vcmp.lt.s32.totalorder %v23, %v30
  %vm34 = vmand %vm27, %vm31
  %vm35 = vmand %vm28, %vm32
  %vm36 = vmand %vm29, %vm33
  %v37 = vsel %vm34, 1.0, 0.0
  %v38 = vsel %vm35, 1.0, 0.0
  %v39 = vsel %vm36, 1.0, 0.0
  %v40 = vld [vmem:[%s1] sm:$0xff]
  %v41 = vld [vmem:[%s1 + $0x8] sm:$0xff]
  %v42 = vld [vmem:[%s1 + $0x10] sm:$0xff]
  %v43 = vld [vmem:[%s1 + $0x18] sm:$0xff]
  %v44 = vld [vmem:[%s1 + $0x20] sm:$0x3]
  %v45 = vld [vmem:[%s1 + $0x28] sm:$0x3]
  %v46 = vld [vmem:[%s1 + $0x30] sm:$0x3]
  %v47 = vld [vmem:[%s1 + $0x38] sm:$0x3]
  %vm48 = vcmask 80896
  %v50 = vsel %vm48, %v37, 0
  %v53 = vsel %vm48, %v38, 0
  %v56 = vsel %vm48, %v39, 0
  %vm58 = vcmask 1041408
  %v60 = vsel %vm58, %v44, 0
  %v63 = vsel %vm58, %v45, 0
  %v66 = vsel %vm58, %v46, 0
  %v69 = vsel %vm58, %v47, 0
  %71 = vmatpush.msra.mxu0 0.0
  %72 = vmatpush.msra.mxu0 0.0
  %73 = vmatpush.msra.mxu0 0.0
  %74 = vmatpush.msra.mxu0 0.0
  %75 = vmatpush.msra.mxu0 0.0
  %76 = vmatpush.msra.mxu0 0.0
  %77 = vmatpush.msra.mxu0 0.0
  %78 = vmatpush.msra.mxu0 0.0
  %79 = vmatpush.msra.mxu0 0.0
  %80 = vmatpush.msra.mxu0 0.0
  %81 = vmatpush.msra.mxu0 0.0
  %82 = vmatpush.msra.mxu0 0.0
  %83 = vmatpush.msra.mxu0 0.0
  %84 = vmatpush.msra.mxu0 0.0
  %v85 = vand.u32 %v60, 4294901760
  %86 = vmatpush.msra.mxu0 %v85
  %v87 = vand.u32 %v40, 4294901760
  %88 = vmatpush.msra.mxu0 %v87
  %v89 = vand.u32 %v50, 4294901760
  %v90 = vsub.f32 %v50, %v89
  %v91 = vand.u32 %v90, 4294901760
  %v92 = vsub.f32 %v90, %v91
  %v93 = vand.u32 %v92, 4294901760
  %94 = vmatmul.f32.gmra.mxu0 %v93
  %v95 = vpop.f32.mrf.mxu0
  %v96 = vadd.f32 0.0, %v95
  %v97 = vand.u32 %v53, 4294901760
  %v98 = vsub.f32 %v53, %v97
  %v99 = vand.u32 %v98, 4294901760
  %v100 = vsub.f32 %v98, %v99
  %v101 = vand.u32 %v100, 4294901760
  %102 = vmatmul.f32.gmra.mxu0 %v101
  %v103 = vpop.f32.mrf.mxu0
  %v104 = vadd.f32 0.0, %v103
  %v105 = vand.u32 %v56, 4294901760
  %v106 = vsub.f32 %v56, %v105
  %v107 = vand.u32 %v106, 4294901760
  %v108 = vsub.f32 %v106, %v107
  %v109 = vand.u32 %v108, 4294901760
  %110 = vmatmul.f32.gmra.mxu0 %v109
  %v111 = vpop.f32.mrf.mxu0
  %v112 = vadd.f32 0.0, %v111
  %113 = vdwg.mxu0
  %114 = vmatpush.msra.mxu0 0.0
  %115 = vmatpush.msra.mxu0 0.0
  %116 = vmatpush.msra.mxu0 0.0
  %117 = vmatpush.msra.mxu0 0.0
  %118 = vmatpush.msra.mxu0 0.0
  %119 = vmatpush.msra.mxu0 0.0
  %120 = vmatpush.msra.mxu0 0.0
  %121 = vmatpush.msra.mxu0 0.0
  %122 = vmatpush.msra.mxu0 0.0
  %123 = vmatpush.msra.mxu0 0.0
  %124 = vmatpush.msra.mxu0 0.0
  %125 = vmatpush.msra.mxu0 0.0
  %126 = vmatpush.msra.mxu0 0.0
  %127 = vmatpush.msra.mxu0 0.0
  %v128 = vand.u32 %v60, 4294901760
  %v129 = vsub.f32 %v60, %v128
  %v130 = vand.u32 %v129, 4294901760
  %v131 = vsub.f32 %v129, %v130
  %v132 = vand.u32 %v131, 4294901760
  %133 = vmatpush.msra.mxu0 %v132
  %v134 = vand.u32 %v40, 4294901760
  %v135 = vsub.f32 %v40, %v134
  %v136 = vand.u32 %v135, 4294901760
  %v137 = vsub.f32 %v135, %v136
  %v138 = vand.u32 %v137, 4294901760
  %139 = vmatpush.msra.mxu0 %v138
  %v140 = vand.u32 %v50, 4294901760
  %141 = vmatmul.f32.gmra.mxu0 %v140
  %v142 = vpop.f32.mrf.mxu0
  %v143 = vadd.f32 %v96, %v142
  %v144 = vand.u32 %v53, 4294901760
  %145 = vmatmul.f32.gmra.mxu0 %v144
  %v146 = vpop.f32.mrf.mxu0
  %v147 = vadd.f32 %v104, %v146
  %v148 = vand.u32 %v56, 4294901760
  %149 = vmatmul.f32.gmra.mxu0 %v148
  %v150 = vpop.f32.mrf.mxu0
  %v151 = vadd.f32 %v112, %v150
  %152 = vdwg.mxu0
  %153 = vmatpush.msra.mxu0 0.0
  %154 = vmatpush.msra.mxu0 0.0
  %155 = vmatpush.msra.mxu0 0.0
  %156 = vmatpush.msra.mxu0 0.0
  %157 = vmatpush.msra.mxu0 0.0
  %158 = vmatpush.msra.mxu0 0.0
  %159 = vmatpush.msra.mxu0 0.0
  %160 = vmatpush.msra.mxu0 0.0
  %161 = vmatpush.msra.mxu0 0.0
  %162 = vmatpush.msra.mxu0 0.0
  %163 = vmatpush.msra.mxu0 0.0
  %164 = vmatpush.msra.mxu0 0.0
  %165 = vmatpush.msra.mxu0 0.0
  %166 = vmatpush.msra.mxu0 0.0
  %v167 = vand.u32 %v60, 4294901760
  %v168 = vsub.f32 %v60, %v167
  %169 = vmatpush.msra.mxu0 %v168
  %v170 = vand.u32 %v40, 4294901760
  %v171 = vsub.f32 %v40, %v170
  %172 = vmatpush.msra.mxu0 %v171
  %v173 = vand.u32 %v50, 4294901760
  %v174 = vsub.f32 %v50, %v173
  %175 = vmatmul.f32.gmra.mxu0 %v174
  %v176 = vpop.f32.mrf.mxu0
  %v177 = vadd.f32 %v143, %v176
  %v178 = vand.u32 %v53, 4294901760
  %v179 = vsub.f32 %v53, %v178
  %180 = vmatmul.f32.gmra.mxu0 %v179
  %v181 = vpop.f32.mrf.mxu0
  %v182 = vadd.f32 %v147, %v181
  %v183 = vand.u32 %v56, 4294901760
  %v184 = vsub.f32 %v56, %v183
  %185 = vmatmul.f32.gmra.mxu0 %v184
  %v186 = vpop.f32.mrf.mxu0
  %v187 = vadd.f32 %v151, %v186
  %188 = vdwg.mxu0
  %189 = vmatpush.msra.mxu0 0.0
  %190 = vmatpush.msra.mxu0 0.0
  %191 = vmatpush.msra.mxu0 0.0
  %192 = vmatpush.msra.mxu0 0.0
  %193 = vmatpush.msra.mxu0 0.0
  %194 = vmatpush.msra.mxu0 0.0
  %195 = vmatpush.msra.mxu0 0.0
  %196 = vmatpush.msra.mxu0 0.0
  %197 = vmatpush.msra.mxu0 0.0
  %198 = vmatpush.msra.mxu0 0.0
  %199 = vmatpush.msra.mxu0 0.0
  %200 = vmatpush.msra.mxu0 0.0
  %201 = vmatpush.msra.mxu0 0.0
  %202 = vmatpush.msra.mxu0 0.0
  %v203 = vand.u32 %v60, 4294901760
  %204 = vmatpush.msra.mxu0 %v203
  %v205 = vand.u32 %v40, 4294901760
  %206 = vmatpush.msra.mxu0 %v205
  %v207 = vand.u32 %v50, 4294901760
  %v208 = vsub.f32 %v50, %v207
  %v209 = vand.u32 %v208, 4294901760
  %210 = vmatmul.f32.gmra.mxu0 %v209
  %v211 = vpop.f32.mrf.mxu0
  %v212 = vadd.f32 %v177, %v211
  %v213 = vand.u32 %v53, 4294901760
  %v214 = vsub.f32 %v53, %v213
  %v215 = vand.u32 %v214, 4294901760
  %216 = vmatmul.f32.gmra.mxu0 %v215
  %v217 = vpop.f32.mrf.mxu0
  %v218 = vadd.f32 %v182, %v217
  %v219 = vand.u32 %v56, 4294901760
  %v220 = vsub.f32 %v56, %v219
  %v221 = vand.u32 %v220, 4294901760
  %222 = vmatmul.f32.gmra.mxu0 %v221
  %v223 = vpop.f32.mrf.mxu0
  %v224 = vadd.f32 %v187, %v223
  %225 = vdwg.mxu0
  %226 = vmatpush.msra.mxu0 0.0
  %227 = vmatpush.msra.mxu0 0.0
  %228 = vmatpush.msra.mxu0 0.0
  %229 = vmatpush.msra.mxu0 0.0
  %230 = vmatpush.msra.mxu0 0.0
  %231 = vmatpush.msra.mxu0 0.0
  %232 = vmatpush.msra.mxu0 0.0
  %233 = vmatpush.msra.mxu0 0.0
  %234 = vmatpush.msra.mxu0 0.0
  %235 = vmatpush.msra.mxu0 0.0
  %236 = vmatpush.msra.mxu0 0.0
  %237 = vmatpush.msra.mxu0 0.0
  %238 = vmatpush.msra.mxu0 0.0
  %239 = vmatpush.msra.mxu0 0.0
  %v240 = vand.u32 %v60, 4294901760
  %v241 = vsub.f32 %v60, %v240
  %v242 = vand.u32 %v241, 4294901760
  %243 = vmatpush.msra.mxu0 %v242
  %v244 = vand.u32 %v40, 4294901760
  %v245 = vsub.f32 %v40, %v244
  %v246 = vand.u32 %v245, 4294901760
  %247 = vmatpush.msra.mxu0 %v246
  %v248 = vand.u32 %v50, 4294901760
  %249 = vmatmul.f32.gmra.mxu0 %v248
  %v250 = vpop.f32.mrf.mxu0
  %v251 = vadd.f32 %v212, %v250
  %v252 = vand.u32 %v53, 4294901760
  %253 = vmatmul.f32.gmra.mxu0 %v252
  %v254 = vpop.f32.mrf.mxu0
  %v255 = vadd.f32 %v218, %v254
  %v256 = vand.u32 %v56, 4294901760
  %257 = vmatmul.f32.gmra.mxu0 %v256
  %v258 = vpop.f32.mrf.mxu0
  %v259 = vadd.f32 %v224, %v258
  %260 = vdwg.mxu0
  %261 = vmatpush.msra.mxu0 0.0
  %262 = vmatpush.msra.mxu0 0.0
  %263 = vmatpush.msra.mxu0 0.0
  %264 = vmatpush.msra.mxu0 0.0
  %265 = vmatpush.msra.mxu0 0.0
  %266 = vmatpush.msra.mxu0 0.0
  %267 = vmatpush.msra.mxu0 0.0
  %268 = vmatpush.msra.mxu0 0.0
  %269 = vmatpush.msra.mxu0 0.0
  %270 = vmatpush.msra.mxu0 0.0
  %271 = vmatpush.msra.mxu0 0.0
  %272 = vmatpush.msra.mxu0 0.0
  %273 = vmatpush.msra.mxu0 0.0
  %274 = vmatpush.msra.mxu0 0.0
  %v275 = vand.u32 %v60, 4294901760
  %276 = vmatpush.msra.mxu0 %v275
  %v277 = vand.u32 %v40, 4294901760
  %278 = vmatpush.msra.mxu0 %v277
  %v279 = vand.u32 %v50, 4294901760
  %280 = vmatmul.f32.gmra.mxu0 %v279
  %v281 = vpop.f32.mrf.mxu0
  %v282 = vadd.f32 %v251, %v281
  %v283 = vand.u32 %v53, 4294901760
  %284 = vmatmul.f32.gmra.mxu0 %v283
  %v285 = vpop.f32.mrf.mxu0
  %v286 = vadd.f32 %v255, %v285
  %v287 = vand.u32 %v56, 4294901760
  %288 = vmatmul.f32.gmra.mxu0 %v287
  %v289 = vpop.f32.mrf.mxu0
  %v290 = vadd.f32 %v259, %v289
  %291 = vdwg.mxu0
  %292 = vmatpush.msra.mxu0 0.0
  %293 = vmatpush.msra.mxu0 0.0
  %294 = vmatpush.msra.mxu0 0.0
  %295 = vmatpush.msra.mxu0 0.0
  %296 = vmatpush.msra.mxu0 0.0
  %297 = vmatpush.msra.mxu0 0.0
  %298 = vmatpush.msra.mxu0 0.0
  %299 = vmatpush.msra.mxu0 0.0
  %300 = vmatpush.msra.mxu0 0.0
  %301 = vmatpush.msra.mxu0 0.0
  %302 = vmatpush.msra.mxu0 0.0
  %303 = vmatpush.msra.mxu0 0.0
  %304 = vmatpush.msra.mxu0 0.0
  %305 = vmatpush.msra.mxu0 0.0
  %v306 = vand.u32 %v63, 4294901760
  %307 = vmatpush.msra.mxu0 %v306
  %v308 = vand.u32 %v41, 4294901760
  %309 = vmatpush.msra.mxu0 %v308
  %v310 = vand.u32 %v50, 4294901760
  %v311 = vsub.f32 %v50, %v310
  %v312 = vand.u32 %v311, 4294901760
  %v313 = vsub.f32 %v311, %v312
  %v314 = vand.u32 %v313, 4294901760
  %315 = vmatmul.f32.gmra.mxu0 %v314
  %v316 = vpop.f32.mrf.mxu0
  %v317 = vadd.f32 0.0, %v316
  %v318 = vand.u32 %v53, 4294901760
  %v319 = vsub.f32 %v53, %v318
  %v320 = vand.u32 %v319, 4294901760
  %v321 = vsub.f32 %v319, %v320
  %v322 = vand.u32 %v321, 4294901760
  %323 = vmatmul.f32.gmra.mxu0 %v322
  %v324 = vpop.f32.mrf.mxu0
  %v325 = vadd.f32 0.0, %v324
  %v326 = vand.u32 %v56, 4294901760
  %v327 = vsub.f32 %v56, %v326
  %v328 = vand.u32 %v327, 4294901760
  %v329 = vsub.f32 %v327, %v328
  %v330 = vand.u32 %v329, 4294901760
  %331 = vmatmul.f32.gmra.mxu0 %v330
  %v332 = vpop.f32.mrf.mxu0
  %v333 = vadd.f32 0.0, %v332
  %334 = vdwg.mxu0
  %335 = vmatpush.msra.mxu0 0.0
  %336 = vmatpush.msra.mxu0 0.0
  %337 = vmatpush.msra.mxu0 0.0
  %338 = vmatpush.msra.mxu0 0.0
  %339 = vmatpush.msra.mxu0 0.0
  %340 = vmatpush.msra.mxu0 0.0
  %341 = vmatpush.msra.mxu0 0.0
  %342 = vmatpush.msra.mxu0 0.0
  %343 = vmatpush.msra.mxu0 0.0
  %344 = vmatpush.msra.mxu0 0.0
  %345 = vmatpush.msra.mxu0 0.0
  %346 = vmatpush.msra.mxu0 0.0
  %347 = vmatpush.msra.mxu0 0.0
  %348 = vmatpush.msra.mxu0 0.0
  %v349 = vand.u32 %v63, 4294901760
  %v350 = vsub.f32 %v63, %v349
  %v351 = vand.u32 %v350, 4294901760
  %v352 = vsub.f32 %v350, %v351
  %v353 = vand.u32 %v352, 4294901760
  %354 = vmatpush.msra.mxu0 %v353
  %v355 = vand.u32 %v41, 4294901760
  %v356 = vsub.f32 %v41, %v355
  %v357 = vand.u32 %v356, 4294901760
  %v358 = vsub.f32 %v356, %v357
  %v359 = vand.u32 %v358, 4294901760
  %360 = vmatpush.msra.mxu0 %v359
  %v361 = vand.u32 %v50, 4294901760
  %362 = vmatmul.f32.gmra.mxu0 %v361
  %v363 = vpop.f32.mrf.mxu0
  %v364 = vadd.f32 %v317, %v363
  %v365 = vand.u32 %v53, 4294901760
  %366 = vmatmul.f32.gmra.mxu0 %v365
  %v367 = vpop.f32.mrf.mxu0
  %v368 = vadd.f32 %v325, %v367
  %v369 = vand.u32 %v56, 4294901760
  %370 = vmatmul.f32.gmra.mxu0 %v369
  %v371 = vpop.f32.mrf.mxu0
  %v372 = vadd.f32 %v333, %v371
  %373 = vdwg.mxu0
  %374 = vmatpush.msra.mxu0 0.0
  %375 = vmatpush.msra.mxu0 0.0
  %376 = vmatpush.msra.mxu0 0.0
  %377 = vmatpush.msra.mxu0 0.0
  %378 = vmatpush.msra.mxu0 0.0
  %379 = vmatpush.msra.mxu0 0.0
  %380 = vmatpush.msra.mxu0 0.0
  %381 = vmatpush.msra.mxu0 0.0
  %382 = vmatpush.msra.mxu0 0.0
  %383 = vmatpush.msra.mxu0 0.0
  %384 = vmatpush.msra.mxu0 0.0
  %385 = vmatpush.msra.mxu0 0.0
  %386 = vmatpush.msra.mxu0 0.0
  %387 = vmatpush.msra.mxu0 0.0
  %v388 = vand.u32 %v63, 4294901760
  %v389 = vsub.f32 %v63, %v388
  %390 = vmatpush.msra.mxu0 %v389
  %v391 = vand.u32 %v41, 4294901760
  %v392 = vsub.f32 %v41, %v391
  %393 = vmatpush.msra.mxu0 %v392
  %v394 = vand.u32 %v50, 4294901760
  %v395 = vsub.f32 %v50, %v394
  %396 = vmatmul.f32.gmra.mxu0 %v395
  %v397 = vpop.f32.mrf.mxu0
  %v398 = vadd.f32 %v364, %v397
  %v399 = vand.u32 %v53, 4294901760
  %v400 = vsub.f32 %v53, %v399
  %401 = vmatmul.f32.gmra.mxu0 %v400
  %v402 = vpop.f32.mrf.mxu0
  %v403 = vadd.f32 %v368, %v402
  %v404 = vand.u32 %v56, 4294901760
  %v405 = vsub.f32 %v56, %v404
  %406 = vmatmul.f32.gmra.mxu0 %v405
  %v407 = vpop.f32.mrf.mxu0
  %v408 = vadd.f32 %v372, %v407
  %409 = vdwg.mxu0
  %410 = vmatpush.msra.mxu0 0.0
  %411 = vmatpush.msra.mxu0 0.0
  %412 = vmatpush.msra.mxu0 0.0
  %413 = vmatpush.msra.mxu0 0.0
  %414 = vmatpush.msra.mxu0 0.0
  %415 = vmatpush.msra.mxu0 0.0
  %416 = vmatpush.msra.mxu0 0.0
  %417 = vmatpush.msra.mxu0 0.0
  %418 = vmatpush.msra.mxu0 0.0
  %419 = vmatpush.msra.mxu0 0.0
  %420 = vmatpush.msra.mxu0 0.0
  %421 = vmatpush.msra.mxu0 0.0
  %422 = vmatpush.msra.mxu0 0.0
  %423 = vmatpush.msra.mxu0 0.0
  %v424 = vand.u32 %v63, 4294901760
  %425 = vmatpush.msra.mxu0 %v424
  %v426 = vand.u32 %v41, 4294901760
  %427 = vmatpush.msra.mxu0 %v426
  %v428 = vand.u32 %v50, 4294901760
  %v429 = vsub.f32 %v50, %v428
  %v430 = vand.u32 %v429, 4294901760
  %431 = vmatmul.f32.gmra.mxu0 %v430
  %v432 = vpop.f32.mrf.mxu0
  %v433 = vadd.f32 %v398, %v432
  %v434 = vand.u32 %v53, 4294901760
  %v435 = vsub.f32 %v53, %v434
  %v436 = vand.u32 %v435, 4294901760
  %437 = vmatmul.f32.gmra.mxu0 %v436
  %v438 = vpop.f32.mrf.mxu0
  %v439 = vadd.f32 %v403, %v438
  %v440 = vand.u32 %v56, 4294901760
  %v441 = vsub.f32 %v56, %v440
  %v442 = vand.u32 %v441, 4294901760
  %443 = vmatmul.f32.gmra.mxu0 %v442
  %v444 = vpop.f32.mrf.mxu0
  %v445 = vadd.f32 %v408, %v444
  %446 = vdwg.mxu0
  %447 = vmatpush.msra.mxu0 0.0
  %448 = vmatpush.msra.mxu0 0.0
  %449 = vmatpush.msra.mxu0 0.0
  %450 = vmatpush.msra.mxu0 0.0
  %451 = vmatpush.msra.mxu0 0.0
  %452 = vmatpush.msra.mxu0 0.0
  %453 = vmatpush.msra.mxu0 0.0
  %454 = vmatpush.msra.mxu0 0.0
  %455 = vmatpush.msra.mxu0 0.0
  %456 = vmatpush.msra.mxu0 0.0
  %457 = vmatpush.msra.mxu0 0.0
  %458 = vmatpush.msra.mxu0 0.0
  %459 = vmatpush.msra.mxu0 0.0
  %460 = vmatpush.msra.mxu0 0.0
  %v461 = vand.u32 %v63, 4294901760
  %v462 = vsub.f32 %v63, %v461
  %v463 = vand.u32 %v462, 4294901760
  %464 = vmatpush.msra.mxu0 %v463
  %v465 = vand.u32 %v41, 4294901760
  %v466 = vsub.f32 %v41, %v465
  %v467 = vand.u32 %v466, 4294901760
  %468 = vmatpush.msra.mxu0 %v467
  %v469 = vand.u32 %v50, 4294901760
  %470 = vmatmul.f32.gmra.mxu0 %v469
  %v471 = vpop.f32.mrf.mxu0
  %v472 = vadd.f32 %v433, %v471
  %v473 = vand.u32 %v53, 4294901760
  %474 = vmatmul.f32.gmra.mxu0 %v473
  %v475 = vpop.f32.mrf.mxu0
  %v476 = vadd.f32 %v439, %v475
  %v477 = vand.u32 %v56, 4294901760
  %478 = vmatmul.f32.gmra.mxu0 %v477
  %v479 = vpop.f32.mrf.mxu0
  %v480 = vadd.f32 %v445, %v479
  %481 = vdwg.mxu0
  %482 = vmatpush.msra.mxu0 0.0
  %483 = vmatpush.msra.mxu0 0.0
  %484 = vmatpush.msra.mxu0 0.0
  %485 = vmatpush.msra.mxu0 0.0
  %486 = vmatpush.msra.mxu0 0.0
  %487 = vmatpush.msra.mxu0 0.0
  %488 = vmatpush.msra.mxu0 0.0
  %489 = vmatpush.msra.mxu0 0.0
  %490 = vmatpush.msra.mxu0 0.0
  %491 = vmatpush.msra.mxu0 0.0
  %492 = vmatpush.msra.mxu0 0.0
  %493 = vmatpush.msra.mxu0 0.0
  %494 = vmatpush.msra.mxu0 0.0
  %495 = vmatpush.msra.mxu0 0.0
  %v496 = vand.u32 %v63, 4294901760
  %497 = vmatpush.msra.mxu0 %v496
  %v498 = vand.u32 %v41, 4294901760
  %499 = vmatpush.msra.mxu0 %v498
  %v500 = vand.u32 %v50, 4294901760
  %501 = vmatmul.f32.gmra.mxu0 %v500
  %v502 = vpop.f32.mrf.mxu0
  %v503 = vadd.f32 %v472, %v502
  %v504 = vand.u32 %v53, 4294901760
  %505 = vmatmul.f32.gmra.mxu0 %v504
  %v506 = vpop.f32.mrf.mxu0
  %v507 = vadd.f32 %v476, %v506
  %v508 = vand.u32 %v56, 4294901760
  %509 = vmatmul.f32.gmra.mxu0 %v508
  %v510 = vpop.f32.mrf.mxu0
  %v511 = vadd.f32 %v480, %v510
  %512 = vdwg.mxu0
  %513 = vmatpush.msra.mxu0 0.0
  %514 = vmatpush.msra.mxu0 0.0
  %515 = vmatpush.msra.mxu0 0.0
  %516 = vmatpush.msra.mxu0 0.0
  %517 = vmatpush.msra.mxu0 0.0
  %518 = vmatpush.msra.mxu0 0.0
  %519 = vmatpush.msra.mxu0 0.0
  %520 = vmatpush.msra.mxu0 0.0
  %521 = vmatpush.msra.mxu0 0.0
  %522 = vmatpush.msra.mxu0 0.0
  %523 = vmatpush.msra.mxu0 0.0
  %524 = vmatpush.msra.mxu0 0.0
  %525 = vmatpush.msra.mxu0 0.0
  %526 = vmatpush.msra.mxu0 0.0
  %v527 = vand.u32 %v66, 4294901760
  %528 = vmatpush.msra.mxu0 %v527
  %v529 = vand.u32 %v42, 4294901760
  %530 = vmatpush.msra.mxu0 %v529
  %v531 = vand.u32 %v50, 4294901760
  %v532 = vsub.f32 %v50, %v531
  %v533 = vand.u32 %v532, 4294901760
  %v534 = vsub.f32 %v532, %v533
  %v535 = vand.u32 %v534, 4294901760
  %536 = vmatmul.f32.gmra.mxu0 %v535
  %v537 = vpop.f32.mrf.mxu0
  %v538 = vadd.f32 0.0, %v537
  %v539 = vand.u32 %v53, 4294901760
  %v540 = vsub.f32 %v53, %v539
  %v541 = vand.u32 %v540, 4294901760
  %v542 = vsub.f32 %v540, %v541
  %v543 = vand.u32 %v542, 4294901760
  %544 = vmatmul.f32.gmra.mxu0 %v543
  %v545 = vpop.f32.mrf.mxu0
  %v546 = vadd.f32 0.0, %v545
  %v547 = vand.u32 %v56, 4294901760
  %v548 = vsub.f32 %v56, %v547
  %v549 = vand.u32 %v548, 4294901760
  %v550 = vsub.f32 %v548, %v549
  %v551 = vand.u32 %v550, 4294901760
  %552 = vmatmul.f32.gmra.mxu0 %v551
  %v553 = vpop.f32.mrf.mxu0
  %v554 = vadd.f32 0.0, %v553
  %555 = vdwg.mxu0
  %556 = vmatpush.msra.mxu0 0.0
  %557 = vmatpush.msra.mxu0 0.0
  %558 = vmatpush.msra.mxu0 0.0
  %559 = vmatpush.msra.mxu0 0.0
  %560 = vmatpush.msra.mxu0 0.0
  %561 = vmatpush.msra.mxu0 0.0
  %562 = vmatpush.msra.mxu0 0.0
  %563 = vmatpush.msra.mxu0 0.0
  %564 = vmatpush.msra.mxu0 0.0
  %565 = vmatpush.msra.mxu0 0.0
  %566 = vmatpush.msra.mxu0 0.0
  %567 = vmatpush.msra.mxu0 0.0
  %568 = vmatpush.msra.mxu0 0.0
  %569 = vmatpush.msra.mxu0 0.0
  %v570 = vand.u32 %v66, 4294901760
  %v571 = vsub.f32 %v66, %v570
  %v572 = vand.u32 %v571, 4294901760
  %v573 = vsub.f32 %v571, %v572
  %v574 = vand.u32 %v573, 4294901760
  %575 = vmatpush.msra.mxu0 %v574
  %v576 = vand.u32 %v42, 4294901760
  %v577 = vsub.f32 %v42, %v576
  %v578 = vand.u32 %v577, 4294901760
  %v579 = vsub.f32 %v577, %v578
  %v580 = vand.u32 %v579, 4294901760
  %581 = vmatpush.msra.mxu0 %v580
  %v582 = vand.u32 %v50, 4294901760
  %583 = vmatmul.f32.gmra.mxu0 %v582
  %v584 = vpop.f32.mrf.mxu0
  %v585 = vadd.f32 %v538, %v584
  %v586 = vand.u32 %v53, 4294901760
  %587 = vmatmul.f32.gmra.mxu0 %v586
  %v588 = vpop.f32.mrf.mxu0
  %v589 = vadd.f32 %v546, %v588
  %v590 = vand.u32 %v56, 4294901760
  %591 = vmatmul.f32.gmra.mxu0 %v590
  %v592 = vpop.f32.mrf.mxu0
  %v593 = vadd.f32 %v554, %v592
  %594 = vdwg.mxu0
  %595 = vmatpush.msra.mxu0 0.0
  %596 = vmatpush.msra.mxu0 0.0
  %597 = vmatpush.msra.mxu0 0.0
  %598 = vmatpush.msra.mxu0 0.0
  %599 = vmatpush.msra.mxu0 0.0
  %600 = vmatpush.msra.mxu0 0.0
  %601 = vmatpush.msra.mxu0 0.0
  %602 = vmatpush.msra.mxu0 0.0
  %603 = vmatpush.msra.mxu0 0.0
  %604 = vmatpush.msra.mxu0 0.0
  %605 = vmatpush.msra.mxu0 0.0
  %606 = vmatpush.msra.mxu0 0.0
  %607 = vmatpush.msra.mxu0 0.0
  %608 = vmatpush.msra.mxu0 0.0
  %v609 = vand.u32 %v66, 4294901760
  %v610 = vsub.f32 %v66, %v609
  %611 = vmatpush.msra.mxu0 %v610
  %v612 = vand.u32 %v42, 4294901760
  %v613 = vsub.f32 %v42, %v612
  %614 = vmatpush.msra.mxu0 %v613
  %v615 = vand.u32 %v50, 4294901760
  %v616 = vsub.f32 %v50, %v615
  %617 = vmatmul.f32.gmra.mxu0 %v616
  %v618 = vpop.f32.mrf.mxu0
  %v619 = vadd.f32 %v585, %v618
  %v620 = vand.u32 %v53, 4294901760
  %v621 = vsub.f32 %v53, %v620
  %622 = vmatmul.f32.gmra.mxu0 %v621
  %v623 = vpop.f32.mrf.mxu0
  %v624 = vadd.f32 %v589, %v623
  %v625 = vand.u32 %v56, 4294901760
  %v626 = vsub.f32 %v56, %v625
  %627 = vmatmul.f32.gmra.mxu0 %v626
  %v628 = vpop.f32.mrf.mxu0
  %v629 = vadd.f32 %v593, %v628
  %630 = vdwg.mxu0
  %631 = vmatpush.msra.mxu0 0.0
  %632 = vmatpush.msra.mxu0 0.0
  %633 = vmatpush.msra.mxu0 0.0
  %634 = vmatpush.msra.mxu0 0.0
  %635 = vmatpush.msra.mxu0 0.0
  %636 = vmatpush.msra.mxu0 0.0
  %637 = vmatpush.msra.mxu0 0.0
  %638 = vmatpush.msra.mxu0 0.0
  %639 = vmatpush.msra.mxu0 0.0
  %640 = vmatpush.msra.mxu0 0.0
  %641 = vmatpush.msra.mxu0 0.0
  %642 = vmatpush.msra.mxu0 0.0
  %643 = vmatpush.msra.mxu0 0.0
  %644 = vmatpush.msra.mxu0 0.0
  %v645 = vand.u32 %v66, 4294901760
  %646 = vmatpush.msra.mxu0 %v645
  %v647 = vand.u32 %v42, 4294901760
  %648 = vmatpush.msra.mxu0 %v647
  %v649 = vand.u32 %v50, 4294901760
  %v650 = vsub.f32 %v50, %v649
  %v651 = vand.u32 %v650, 4294901760
  %652 = vmatmul.f32.gmra.mxu0 %v651
  %v653 = vpop.f32.mrf.mxu0
  %v654 = vadd.f32 %v619, %v653
  %v655 = vand.u32 %v53, 4294901760
  %v656 = vsub.f32 %v53, %v655
  %v657 = vand.u32 %v656, 4294901760
  %658 = vmatmul.f32.gmra.mxu0 %v657
  %v659 = vpop.f32.mrf.mxu0
  %v660 = vadd.f32 %v624, %v659
  %v661 = vand.u32 %v56, 4294901760
  %v662 = vsub.f32 %v56, %v661
  %v663 = vand.u32 %v662, 4294901760
  %664 = vmatmul.f32.gmra.mxu0 %v663
  %v665 = vpop.f32.mrf.mxu0
  %v666 = vadd.f32 %v629, %v665
  %667 = vdwg.mxu0
  %668 = vmatpush.msra.mxu0 0.0
  %669 = vmatpush.msra.mxu0 0.0
  %670 = vmatpush.msra.mxu0 0.0
  %671 = vmatpush.msra.mxu0 0.0
  %672 = vmatpush.msra.mxu0 0.0
  %673 = vmatpush.msra.mxu0 0.0
  %674 = vmatpush.msra.mxu0 0.0
  %675 = vmatpush.msra.mxu0 0.0
  %676 = vmatpush.msra.mxu0 0.0
  %677 = vmatpush.msra.mxu0 0.0
  %678 = vmatpush.msra.mxu0 0.0
  %679 = vmatpush.msra.mxu0 0.0
  %680 = vmatpush.msra.mxu0 0.0
  %681 = vmatpush.msra.mxu0 0.0
  %v682 = vand.u32 %v66, 4294901760
  %v683 = vsub.f32 %v66, %v682
  %v684 = vand.u32 %v683, 4294901760
  %685 = vmatpush.msra.mxu0 %v684
  %v686 = vand.u32 %v42, 4294901760
  %v687 = vsub.f32 %v42, %v686
  %v688 = vand.u32 %v687, 4294901760
  %689 = vmatpush.msra.mxu0 %v688
  %v690 = vand.u32 %v50, 4294901760
  %691 = vmatmul.f32.gmra.mxu0 %v690
  %v692 = vpop.f32.mrf.mxu0
  %v693 = vadd.f32 %v654, %v692
  %v694 = vand.u32 %v53, 4294901760
  %695 = vmatmul.f32.gmra.mxu0 %v694
  %v696 = vpop.f32.mrf.mxu0
  %v697 = vadd.f32 %v660, %v696
  %v698 = vand.u32 %v56, 4294901760
  %699 = vmatmul.f32.gmra.mxu0 %v698
  %v700 = vpop.f32.mrf.mxu0
  %v701 = vadd.f32 %v666, %v700
  %702 = vdwg.mxu0
  %703 = vmatpush.msra.mxu0 0.0
  %704 = vmatpush.msra.mxu0 0.0
  %705 = vmatpush.msra.mxu0 0.0
  %706 = vmatpush.msra.mxu0 0.0
  %707 = vmatpush.msra.mxu0 0.0
  %708 = vmatpush.msra.mxu0 0.0
  %709 = vmatpush.msra.mxu0 0.0
  %710 = vmatpush.msra.mxu0 0.0
  %711 = vmatpush.msra.mxu0 0.0
  %712 = vmatpush.msra.mxu0 0.0
  %713 = vmatpush.msra.mxu0 0.0
  %714 = vmatpush.msra.mxu0 0.0
  %715 = vmatpush.msra.mxu0 0.0
  %716 = vmatpush.msra.mxu0 0.0
  %v717 = vand.u32 %v66, 4294901760
  %718 = vmatpush.msra.mxu0 %v717
  %v719 = vand.u32 %v42, 4294901760
  %720 = vmatpush.msra.mxu0 %v719
  %v721 = vand.u32 %v50, 4294901760
  %722 = vmatmul.f32.gmra.mxu0 %v721
  %v723 = vpop.f32.mrf.mxu0
  %v724 = vadd.f32 %v693, %v723
  %v725 = vand.u32 %v53, 4294901760
  %726 = vmatmul.f32.gmra.mxu0 %v725
  %v727 = vpop.f32.mrf.mxu0
  %v728 = vadd.f32 %v697, %v727
  %v729 = vand.u32 %v56, 4294901760
  %730 = vmatmul.f32.gmra.mxu0 %v729
  %v731 = vpop.f32.mrf.mxu0
  %v732 = vadd.f32 %v701, %v731
  %733 = vdwg.mxu0
  %734 = vmatpush.msra.mxu0 0.0
  %735 = vmatpush.msra.mxu0 0.0
  %736 = vmatpush.msra.mxu0 0.0
  %737 = vmatpush.msra.mxu0 0.0
  %738 = vmatpush.msra.mxu0 0.0
  %739 = vmatpush.msra.mxu0 0.0
  %740 = vmatpush.msra.mxu0 0.0
  %741 = vmatpush.msra.mxu0 0.0
  %742 = vmatpush.msra.mxu0 0.0
  %743 = vmatpush.msra.mxu0 0.0
  %744 = vmatpush.msra.mxu0 0.0
  %745 = vmatpush.msra.mxu0 0.0
  %746 = vmatpush.msra.mxu0 0.0
  %747 = vmatpush.msra.mxu0 0.0
  %v748 = vand.u32 %v69, 4294901760
  %749 = vmatpush.msra.mxu0 %v748
  %v750 = vand.u32 %v43, 4294901760
  %751 = vmatpush.msra.mxu0 %v750
  %v752 = vand.u32 %v50, 4294901760
  %v753 = vsub.f32 %v50, %v752
  %v754 = vand.u32 %v753, 4294901760
  %v755 = vsub.f32 %v753, %v754
  %v756 = vand.u32 %v755, 4294901760
  %757 = vmatmul.f32.gmra.mxu0 %v756
  %v758 = vpop.f32.mrf.mxu0
  %v759 = vadd.f32 0.0, %v758
  %v760 = vand.u32 %v53, 4294901760
  %v761 = vsub.f32 %v53, %v760
  %v762 = vand.u32 %v761, 4294901760
  %v763 = vsub.f32 %v761, %v762
  %v764 = vand.u32 %v763, 4294901760
  %765 = vmatmul.f32.gmra.mxu0 %v764
  %v766 = vpop.f32.mrf.mxu0
  %v767 = vadd.f32 0.0, %v766
  %v768 = vand.u32 %v56, 4294901760
  %v769 = vsub.f32 %v56, %v768
  %v770 = vand.u32 %v769, 4294901760
  %v771 = vsub.f32 %v769, %v770
  %v772 = vand.u32 %v771, 4294901760
  %773 = vmatmul.f32.gmra.mxu0 %v772
  %v774 = vpop.f32.mrf.mxu0
  %v775 = vadd.f32 0.0, %v774
  %776 = vdwg.mxu0
  %777 = vmatpush.msra.mxu0 0.0
  %778 = vmatpush.msra.mxu0 0.0
  %779 = vmatpush.msra.mxu0 0.0
  %780 = vmatpush.msra.mxu0 0.0
  %781 = vmatpush.msra.mxu0 0.0
  %782 = vmatpush.msra.mxu0 0.0
  %783 = vmatpush.msra.mxu0 0.0
  %784 = vmatpush.msra.mxu0 0.0
  %785 = vmatpush.msra.mxu0 0.0
  %786 = vmatpush.msra.mxu0 0.0
  %787 = vmatpush.msra.mxu0 0.0
  %788 = vmatpush.msra.mxu0 0.0
  %789 = vmatpush.msra.mxu0 0.0
  %790 = vmatpush.msra.mxu0 0.0
  %v791 = vand.u32 %v69, 4294901760
  %v792 = vsub.f32 %v69, %v791
  %v793 = vand.u32 %v792, 4294901760
  %v794 = vsub.f32 %v792, %v793
  %v795 = vand.u32 %v794, 4294901760
  %796 = vmatpush.msra.mxu0 %v795
  %v797 = vand.u32 %v43, 4294901760
  %v798 = vsub.f32 %v43, %v797
  %v799 = vand.u32 %v798, 4294901760
  %v800 = vsub.f32 %v798, %v799
  %v801 = vand.u32 %v800, 4294901760
  %802 = vmatpush.msra.mxu0 %v801
  %v803 = vand.u32 %v50, 4294901760
  %804 = vmatmul.f32.gmra.mxu0 %v803
  %v805 = vpop.f32.mrf.mxu0
  %v806 = vadd.f32 %v759, %v805
  %v807 = vand.u32 %v53, 4294901760
  %808 = vmatmul.f32.gmra.mxu0 %v807
  %v809 = vpop.f32.mrf.mxu0
  %v810 = vadd.f32 %v767, %v809
  %v811 = vand.u32 %v56, 4294901760
  %812 = vmatmul.f32.gmra.mxu0 %v811
  %v813 = vpop.f32.mrf.mxu0
  %v814 = vadd.f32 %v775, %v813
  %815 = vdwg.mxu0
  %816 = vmatpush.msra.mxu0 0.0
  %817 = vmatpush.msra.mxu0 0.0
  %818 = vmatpush.msra.mxu0 0.0
  %819 = vmatpush.msra.mxu0 0.0
  %820 = vmatpush.msra.mxu0 0.0
  %821 = vmatpush.msra.mxu0 0.0
  %822 = vmatpush.msra.mxu0 0.0
  %823 = vmatpush.msra.mxu0 0.0
  %824 = vmatpush.msra.mxu0 0.0
  %825 = vmatpush.msra.mxu0 0.0
  %826 = vmatpush.msra.mxu0 0.0
  %827 = vmatpush.msra.mxu0 0.0
  %828 = vmatpush.msra.mxu0 0.0
  %829 = vmatpush.msra.mxu0 0.0
  %v830 = vand.u32 %v69, 4294901760
  %v831 = vsub.f32 %v69, %v830
  %832 = vmatpush.msra.mxu0 %v831
  %v833 = vand.u32 %v43, 4294901760
  %v834 = vsub.f32 %v43, %v833
  %835 = vmatpush.msra.mxu0 %v834
  %v836 = vand.u32 %v50, 4294901760
  %v837 = vsub.f32 %v50, %v836
  %838 = vmatmul.f32.gmra.mxu0 %v837
  %v839 = vpop.f32.mrf.mxu0
  %v840 = vadd.f32 %v806, %v839
  %v841 = vand.u32 %v53, 4294901760
  %v842 = vsub.f32 %v53, %v841
  %843 = vmatmul.f32.gmra.mxu0 %v842
  %v844 = vpop.f32.mrf.mxu0
  %v845 = vadd.f32 %v810, %v844
  %v846 = vand.u32 %v56, 4294901760
  %v847 = vsub.f32 %v56, %v846
  %848 = vmatmul.f32.gmra.mxu0 %v847
  %v849 = vpop.f32.mrf.mxu0
  %v850 = vadd.f32 %v814, %v849
  %851 = vdwg.mxu0
  %852 = vmatpush.msra.mxu0 0.0
  %853 = vmatpush.msra.mxu0 0.0
  %854 = vmatpush.msra.mxu0 0.0
  %855 = vmatpush.msra.mxu0 0.0
  %856 = vmatpush.msra.mxu0 0.0
  %857 = vmatpush.msra.mxu0 0.0
  %858 = vmatpush.msra.mxu0 0.0
  %859 = vmatpush.msra.mxu0 0.0
  %860 = vmatpush.msra.mxu0 0.0
  %861 = vmatpush.msra.mxu0 0.0
  %862 = vmatpush.msra.mxu0 0.0
  %863 = vmatpush.msra.mxu0 0.0
  %864 = vmatpush.msra.mxu0 0.0
  %865 = vmatpush.msra.mxu0 0.0
  %v866 = vand.u32 %v69, 4294901760
  %867 = vmatpush.msra.mxu0 %v866
  %v868 = vand.u32 %v43, 4294901760
  %869 = vmatpush.msra.mxu0 %v868
  %v870 = vand.u32 %v50, 4294901760
  %v871 = vsub.f32 %v50, %v870
  %v872 = vand.u32 %v871, 4294901760
  %873 = vmatmul.f32.gmra.mxu0 %v872
  %v874 = vpop.f32.mrf.mxu0
  %v875 = vadd.f32 %v840, %v874
  %v876 = vand.u32 %v53, 4294901760
  %v877 = vsub.f32 %v53, %v876
  %v878 = vand.u32 %v877, 4294901760
  %879 = vmatmul.f32.gmra.mxu0 %v878
  %v880 = vpop.f32.mrf.mxu0
  %v881 = vadd.f32 %v845, %v880
  %v882 = vand.u32 %v56, 4294901760
  %v883 = vsub.f32 %v56, %v882
  %v884 = vand.u32 %v883, 4294901760
  %885 = vmatmul.f32.gmra.mxu0 %v884
  %v886 = vpop.f32.mrf.mxu0
  %v887 = vadd.f32 %v850, %v886
  %888 = vdwg.mxu0
  %889 = vmatpush.msra.mxu0 0.0
  %890 = vmatpush.msra.mxu0 0.0
  %891 = vmatpush.msra.mxu0 0.0
  %892 = vmatpush.msra.mxu0 0.0
  %893 = vmatpush.msra.mxu0 0.0
  %894 = vmatpush.msra.mxu0 0.0
  %895 = vmatpush.msra.mxu0 0.0
  %896 = vmatpush.msra.mxu0 0.0
  %897 = vmatpush.msra.mxu0 0.0
  %898 = vmatpush.msra.mxu0 0.0
  %899 = vmatpush.msra.mxu0 0.0
  %900 = vmatpush.msra.mxu0 0.0
  %901 = vmatpush.msra.mxu0 0.0
  %902 = vmatpush.msra.mxu0 0.0
  %v903 = vand.u32 %v69, 4294901760
  %v904 = vsub.f32 %v69, %v903
  %v905 = vand.u32 %v904, 4294901760
  %906 = vmatpush.msra.mxu0 %v905
  %v907 = vand.u32 %v43, 4294901760
  %v908 = vsub.f32 %v43, %v907
  %v909 = vand.u32 %v908, 4294901760
  %910 = vmatpush.msra.mxu0 %v909
  %v911 = vand.u32 %v50, 4294901760
  %912 = vmatmul.f32.gmra.mxu0 %v911
  %v913 = vpop.f32.mrf.mxu0
  %v914 = vadd.f32 %v875, %v913
  %v915 = vand.u32 %v53, 4294901760
  %916 = vmatmul.f32.gmra.mxu0 %v915
  %v917 = vpop.f32.mrf.mxu0
  %v918 = vadd.f32 %v881, %v917
  %v919 = vand.u32 %v56, 4294901760
  %920 = vmatmul.f32.gmra.mxu0 %v919
  %v921 = vpop.f32.mrf.mxu0
  %v922 = vadd.f32 %v887, %v921
  %923 = vdwg.mxu0
  %924 = vmatpush.msra.mxu0 0.0
  %925 = vmatpush.msra.mxu0 0.0
  %926 = vmatpush.msra.mxu0 0.0
  %927 = vmatpush.msra.mxu0 0.0
  %928 = vmatpush.msra.mxu0 0.0
  %929 = vmatpush.msra.mxu0 0.0
  %930 = vmatpush.msra.mxu0 0.0
  %931 = vmatpush.msra.mxu0 0.0
  %932 = vmatpush.msra.mxu0 0.0
  %933 = vmatpush.msra.mxu0 0.0
  %934 = vmatpush.msra.mxu0 0.0
  %935 = vmatpush.msra.mxu0 0.0
  %936 = vmatpush.msra.mxu0 0.0
  %937 = vmatpush.msra.mxu0 0.0
  %v938 = vand.u32 %v69, 4294901760
  %939 = vmatpush.msra.mxu0 %v938
  %v940 = vand.u32 %v43, 4294901760
  %941 = vmatpush.msra.mxu0 %v940
  %v942 = vand.u32 %v50, 4294901760
  %943 = vmatmul.f32.gmra.mxu0 %v942
  %v944 = vpop.f32.mrf.mxu0
  %v945 = vadd.f32 %v914, %v944
  %v946 = vand.u32 %v53, 4294901760
  %947 = vmatmul.f32.gmra.mxu0 %v946
  %v948 = vpop.f32.mrf.mxu0
  %v949 = vadd.f32 %v918, %v948
  %v950 = vand.u32 %v56, 4294901760
  %951 = vmatmul.f32.gmra.mxu0 %v950
  %v952 = vpop.f32.mrf.mxu0
  %v953 = vadd.f32 %v922, %v952
  %954 = vdwg.mxu0
  %v955 = vld [vmem:[%s0] sm:$0xff]
  %v956 = vld [vmem:[%s0 + $0x8] sm:$0xff]
  %v957 = vld [vmem:[%s0 + $0x10] sm:$0xf]
  %vm958 = vcmask 146432
  %v959 = vsel %vm958, %v955, 0.0
  %v960 = vsel %vm958, %v956, 0.0
  %v961 = vsel %vm958, %v957, 0.0
  %v962 = vld [vmem:[%s4] sm:$0x1]
  %v963 = vmul.f32 %v959, %v282
  %v964 = vmul.f32 %v960, %v286
  %v965 = vmul.f32 %v961, %v290
  %969 = vrot.lane.b32.xlu0 %v282, 96
  %v970 = vpop.permute.xlu0 %969
  %971 = vrot.lane.b32.xlu0 %v286, 96
  %v972 = vpop.permute.xlu0 %971
  %973 = vrot.lane.b32.xlu0 %v290, 96
  %v974 = vpop.permute.xlu0 %973
  %v978 = vadd.f32 %v963, %v970
  %v979 = vadd.f32 %v964, %v972
  %v980 = vadd.f32 %v965, %v974
  %v981 = vld [vmem:[%s2] sm:$0xff]
  %v982 = vld [vmem:[%s2 + $0x8] sm:$0xff]
  %v983 = vld [vmem:[%s2 + $0x10] sm:$0xff]
  %v984 = vld [vmem:[%s2 + $0x18] sm:$0xff]
  %v986 = vperm.slane %v962, 0
  %vm988 = vcmask 261120
  %v990 = vsel %vm988, %v978, 0
  %v993 = vsel %vm988, %v979, 0
  %v996 = vsel %vm988, %v980, 0
  %998 = vmatpush.msra.mxu0 0.0
  %999 = vmatpush.msra.mxu0 0.0
  %1000 = vmatpush.msra.mxu0 0.0
  %1001 = vmatpush.msra.mxu0 0.0
  %1002 = vmatpush.msra.mxu0 0.0
  %1003 = vmatpush.msra.mxu0 0.0
  %1004 = vmatpush.msra.mxu0 0.0
  %1005 = vmatpush.msra.mxu0 0.0
  %1006 = vmatpush.msra.mxu0 0.0
  %1007 = vmatpush.msra.mxu0 0.0
  %1008 = vmatpush.msra.mxu0 0.0
  %1009 = vmatpush.msra.mxu0 0.0
  %1010 = vmatpush.msra.mxu0 %v984
  %1011 = vmatpush.msra.mxu0 %v983
  %1012 = vmatpush.msra.mxu0 %v982
  %1013 = vmatpush.msra.mxu0 %v981
  %1014 = vmatmul.f32.gmra.mxu0 %v990
  %v1015 = vpop.f32.mrf.mxu0
  %v1016 = vadd.f32 %v986, %v1015
  %1017 = vmatmul.f32.gmra.mxu0 %v993
  %v1018 = vpop.f32.mrf.mxu0
  %v1019 = vadd.f32 %v986, %v1018
  %1020 = vmatmul.f32.gmra.mxu0 %v996
  %v1021 = vpop.f32.mrf.mxu0
  %v1022 = vadd.f32 %v986, %v1021
  %1023 = vdwg.mxu0
  %v1024 = vld [vmem:[%s3] sm:$0xff]
  %v1025 = vld [vmem:[%s3 + $0x8] sm:$0xff]
  %v1026 = vld [vmem:[%s3 + $0x10] sm:$0xf]
  %1030 = vrot.lane.b32.xlu0 %v1016, 96
  %v1031 = vpop.permute.xlu0 %1030
  %1032 = vrot.lane.b32.xlu0 %v1019, 96
  %v1033 = vpop.permute.xlu0 %1032
  %1034 = vrot.lane.b32.xlu0 %v1022, 96
  %v1035 = vpop.permute.xlu0 %1034
  %1038 = vrot.lane.b32.xlu0 %v986, 64
  %v1039 = vpop.permute.xlu0 %1038
  %vm1041 = vcmask 162816
  %v1043 = vsel %vm1041, %v1024, 0
  %v1046 = vsel %vm1041, %v1025, 0
  %v1049 = vsel %vm1041, %v1026, 0
  %vm1051 = vcmask 1043456
  %v1052 = vsel %vm1051, %v1035, 0
  %1054 = vmatpush.msra.mxu0 0.0
  %1055 = vmatpush.msra.mxu0 0.0
  %1056 = vmatpush.msra.mxu0 0.0
  %1057 = vmatpush.msra.mxu0 0.0
  %1058 = vmatpush.msra.mxu0 0.0
  %1059 = vmatpush.msra.mxu0 0.0
  %1060 = vmatpush.msra.mxu0 0.0
  %1061 = vmatpush.msra.mxu0 0.0
  %1062 = vmatpush.msra.mxu0 0.0
  %1063 = vmatpush.msra.mxu0 0.0
  %1064 = vmatpush.msra.mxu0 0.0
  %1065 = vmatpush.msra.mxu0 0.0
  %1066 = vmatpush.msra.mxu0 0.0
  %1067 = vmatpush.msra.mxu0 %v1052
  %1068 = vmatpush.msra.mxu0 %v1033
  %1069 = vmatpush.msra.mxu0 %v1031
  %1070 = vmatmul.f32.gmra.mxu0 %v1043
  %v1071 = vpop.f32.mrf.mxu0
  %v1072 = vadd.f32 %v1039, %v1071
  %1073 = vmatmul.f32.gmra.mxu0 %v1046
  %v1074 = vpop.f32.mrf.mxu0
  %v1075 = vadd.f32 %v1039, %v1074
  %1076 = vmatmul.f32.gmra.mxu0 %v1049
  %v1077 = vpop.f32.mrf.mxu0
  %v1078 = vadd.f32 %v1039, %v1077
  %1079 = vdwg.mxu0
  %1080 = vrot.lane.b32.xlu0 %v282, 64
  %v1081 = vpop.permute.xlu0 %1080
  %1082 = vrot.lane.b32.xlu0 %v286, 64
  %v1083 = vpop.permute.xlu0 %1082
  %1084 = vrot.lane.b32.xlu0 %v290, 64
  %v1085 = vpop.permute.xlu0 %1084
  %v1089 = vmul.f32 %v1072, %v1081
  %v1090 = vmul.f32 %v1075, %v1083
  %v1091 = vmul.f32 %v1078, %v1085
  %1092 = vrot.lane.b32.xlu0 %v282, 32
  %v1093 = vpop.permute.xlu0 %1092
  %1094 = vrot.lane.b32.xlu0 %v286, 32
  %v1095 = vpop.permute.xlu0 %1094
  %1096 = vrot.lane.b32.xlu0 %v290, 32
  %v1097 = vpop.permute.xlu0 %1096
  %v1101 = vadd.f32 %v1089, %v1093
  %v1102 = vadd.f32 %v1090, %v1095
  %v1103 = vadd.f32 %v1091, %v1097
  %v1104 = vmax.f32 %v1101, 0.0
  %v1105 = vmax.f32 %v1102, 0.0
  %v1106 = vmax.f32 %v1103, 0.0
  %v1107 = vadd.f32 %v1104, %v1016
  %v1108 = vadd.f32 %v1105, %v1019
  %v1109 = vadd.f32 %v1106, %v1022
  %s1110 = scalar_lea.vmem %s4, 1
  %v1111 = vld [vmem:[%s1110] sm:$0x1]
  %v1112 = vmul.f32 %v1107, %v503
  %v1113 = vmul.f32 %v1108, %v507
  %v1114 = vmul.f32 %v1109, %v511
  %1118 = vrot.lane.b32.xlu0 %v503, 96
  %v1119 = vpop.permute.xlu0 %1118
  %1120 = vrot.lane.b32.xlu0 %v507, 96
  %v1121 = vpop.permute.xlu0 %1120
  %1122 = vrot.lane.b32.xlu0 %v511, 96
  %v1123 = vpop.permute.xlu0 %1122
  %v1127 = vadd.f32 %v1112, %v1119
  %v1128 = vadd.f32 %v1113, %v1121
  %v1129 = vadd.f32 %v1114, %v1123
  %s1130 = scalar_lea.vmem %s2, 32
  %v1131 = vld [vmem:[%s1130] sm:$0xff]
  %v1132 = vld [vmem:[%s1130 + $0x8] sm:$0xff]
  %v1133 = vld [vmem:[%s1130 + $0x10] sm:$0xff]
  %v1134 = vld [vmem:[%s1130 + $0x18] sm:$0xff]
  %v1136 = vperm.slane %v1111, 0
  %v1139 = vsel %vm988, %v1127, 0
  %v1142 = vsel %vm988, %v1128, 0
  %v1145 = vsel %vm988, %v1129, 0
  %1147 = vmatpush.msra.mxu0 0.0
  %1148 = vmatpush.msra.mxu0 0.0
  %1149 = vmatpush.msra.mxu0 0.0
  %1150 = vmatpush.msra.mxu0 0.0
  %1151 = vmatpush.msra.mxu0 0.0
  %1152 = vmatpush.msra.mxu0 0.0
  %1153 = vmatpush.msra.mxu0 0.0
  %1154 = vmatpush.msra.mxu0 0.0
  %1155 = vmatpush.msra.mxu0 0.0
  %1156 = vmatpush.msra.mxu0 0.0
  %1157 = vmatpush.msra.mxu0 0.0
  %1158 = vmatpush.msra.mxu0 0.0
  %1159 = vmatpush.msra.mxu0 %v1134
  %1160 = vmatpush.msra.mxu0 %v1133
  %1161 = vmatpush.msra.mxu0 %v1132
  %1162 = vmatpush.msra.mxu0 %v1131
  %1163 = vmatmul.f32.gmra.mxu0 %v1139
  %v1164 = vpop.f32.mrf.mxu0
  %v1165 = vadd.f32 %v1136, %v1164
  %1166 = vmatmul.f32.gmra.mxu0 %v1142
  %v1167 = vpop.f32.mrf.mxu0
  %v1168 = vadd.f32 %v1136, %v1167
  %1169 = vmatmul.f32.gmra.mxu0 %v1145
  %v1170 = vpop.f32.mrf.mxu0
  %v1171 = vadd.f32 %v1136, %v1170
  %1172 = vdwg.mxu0
  %s1173 = scalar_lea.vmem %s3, 24
  %v1174 = vld [vmem:[%s1173] sm:$0xff]
  %v1175 = vld [vmem:[%s1173 + $0x8] sm:$0xff]
  %v1176 = vld [vmem:[%s1173 + $0x10] sm:$0xf]
  %1180 = vrot.lane.b32.xlu0 %v1165, 96
  %v1181 = vpop.permute.xlu0 %1180
  %1182 = vrot.lane.b32.xlu0 %v1168, 96
  %v1183 = vpop.permute.xlu0 %1182
  %1184 = vrot.lane.b32.xlu0 %v1171, 96
  %v1185 = vpop.permute.xlu0 %1184
  %1188 = vrot.lane.b32.xlu0 %v1136, 64
  %v1189 = vpop.permute.xlu0 %1188
  %v1192 = vsel %vm1041, %v1174, 0
  %v1195 = vsel %vm1041, %v1175, 0
  %v1198 = vsel %vm1041, %v1176, 0
  %v1200 = vsel %vm1051, %v1185, 0
  %1202 = vmatpush.msra.mxu0 0.0
  %1203 = vmatpush.msra.mxu0 0.0
  %1204 = vmatpush.msra.mxu0 0.0
  %1205 = vmatpush.msra.mxu0 0.0
  %1206 = vmatpush.msra.mxu0 0.0
  %1207 = vmatpush.msra.mxu0 0.0
  %1208 = vmatpush.msra.mxu0 0.0
  %1209 = vmatpush.msra.mxu0 0.0
  %1210 = vmatpush.msra.mxu0 0.0
  %1211 = vmatpush.msra.mxu0 0.0
  %1212 = vmatpush.msra.mxu0 0.0
  %1213 = vmatpush.msra.mxu0 0.0
  %1214 = vmatpush.msra.mxu0 0.0
  %1215 = vmatpush.msra.mxu0 %v1200
  %1216 = vmatpush.msra.mxu0 %v1183
  %1217 = vmatpush.msra.mxu0 %v1181
  %1218 = vmatmul.f32.gmra.mxu0 %v1192
  %v1219 = vpop.f32.mrf.mxu0
  %v1220 = vadd.f32 %v1189, %v1219
  %1221 = vmatmul.f32.gmra.mxu0 %v1195
  %v1222 = vpop.f32.mrf.mxu0
  %v1223 = vadd.f32 %v1189, %v1222
  %1224 = vmatmul.f32.gmra.mxu0 %v1198
  %v1225 = vpop.f32.mrf.mxu0
  %v1226 = vadd.f32 %v1189, %v1225
  %1227 = vdwg.mxu0
  %1228 = vrot.lane.b32.xlu0 %v503, 64
  %v1229 = vpop.permute.xlu0 %1228
  %1230 = vrot.lane.b32.xlu0 %v507, 64
  %v1231 = vpop.permute.xlu0 %1230
  %1232 = vrot.lane.b32.xlu0 %v511, 64
  %v1233 = vpop.permute.xlu0 %1232
  %v1237 = vmul.f32 %v1220, %v1229
  %v1238 = vmul.f32 %v1223, %v1231
  %v1239 = vmul.f32 %v1226, %v1233
  %1240 = vrot.lane.b32.xlu0 %v503, 32
  %v1241 = vpop.permute.xlu0 %1240
  %1242 = vrot.lane.b32.xlu0 %v507, 32
  %v1243 = vpop.permute.xlu0 %1242
  %1244 = vrot.lane.b32.xlu0 %v511, 32
  %v1245 = vpop.permute.xlu0 %1244
  %v1249 = vadd.f32 %v1237, %v1241
  %v1250 = vadd.f32 %v1238, %v1243
  %v1251 = vadd.f32 %v1239, %v1245
  %v1252 = vmax.f32 %v1249, 0.0
  %v1253 = vmax.f32 %v1250, 0.0
  %v1254 = vmax.f32 %v1251, 0.0
  %v1255 = vadd.f32 %v1252, %v1165
  %v1256 = vadd.f32 %v1253, %v1168
  %v1257 = vadd.f32 %v1254, %v1171
  %s1258 = scalar_lea.vmem %s4, 2
  %v1259 = vld [vmem:[%s1258] sm:$0x1]
  %v1260 = vmul.f32 %v1255, %v724
  %v1261 = vmul.f32 %v1256, %v728
  %v1262 = vmul.f32 %v1257, %v732
  %1266 = vrot.lane.b32.xlu0 %v724, 96
  %v1267 = vpop.permute.xlu0 %1266
  %1268 = vrot.lane.b32.xlu0 %v728, 96
  %v1269 = vpop.permute.xlu0 %1268
  %1270 = vrot.lane.b32.xlu0 %v732, 96
  %v1271 = vpop.permute.xlu0 %1270
  %v1275 = vadd.f32 %v1260, %v1267
  %v1276 = vadd.f32 %v1261, %v1269
  %v1277 = vadd.f32 %v1262, %v1271
  %s1278 = scalar_lea.vmem %s2, 64
  %v1279 = vld [vmem:[%s1278] sm:$0xff]
  %v1280 = vld [vmem:[%s1278 + $0x8] sm:$0xff]
  %v1281 = vld [vmem:[%s1278 + $0x10] sm:$0xff]
  %v1282 = vld [vmem:[%s1278 + $0x18] sm:$0xff]
  %v1284 = vperm.slane %v1259, 0
  %v1287 = vsel %vm988, %v1275, 0
  %v1290 = vsel %vm988, %v1276, 0
  %v1293 = vsel %vm988, %v1277, 0
  %1295 = vmatpush.msra.mxu0 0.0
  %1296 = vmatpush.msra.mxu0 0.0
  %1297 = vmatpush.msra.mxu0 0.0
  %1298 = vmatpush.msra.mxu0 0.0
  %1299 = vmatpush.msra.mxu0 0.0
  %1300 = vmatpush.msra.mxu0 0.0
  %1301 = vmatpush.msra.mxu0 0.0
  %1302 = vmatpush.msra.mxu0 0.0
  %1303 = vmatpush.msra.mxu0 0.0
  %1304 = vmatpush.msra.mxu0 0.0
  %1305 = vmatpush.msra.mxu0 0.0
  %1306 = vmatpush.msra.mxu0 0.0
  %1307 = vmatpush.msra.mxu0 %v1282
  %1308 = vmatpush.msra.mxu0 %v1281
  %1309 = vmatpush.msra.mxu0 %v1280
  %1310 = vmatpush.msra.mxu0 %v1279
  %1311 = vmatmul.f32.gmra.mxu0 %v1287
  %v1312 = vpop.f32.mrf.mxu0
  %v1313 = vadd.f32 %v1284, %v1312
  %1314 = vmatmul.f32.gmra.mxu0 %v1290
  %v1315 = vpop.f32.mrf.mxu0
  %v1316 = vadd.f32 %v1284, %v1315
  %1317 = vmatmul.f32.gmra.mxu0 %v1293
  %v1318 = vpop.f32.mrf.mxu0
  %v1319 = vadd.f32 %v1284, %v1318
  %1320 = vdwg.mxu0
  %s1321 = scalar_lea.vmem %s3, 48
  %v1322 = vld [vmem:[%s1321] sm:$0xff]
  %v1323 = vld [vmem:[%s1321 + $0x8] sm:$0xff]
  %v1324 = vld [vmem:[%s1321 + $0x10] sm:$0xf]
  %1328 = vrot.lane.b32.xlu0 %v1313, 96
  %v1329 = vpop.permute.xlu0 %1328
  %1330 = vrot.lane.b32.xlu0 %v1316, 96
  %v1331 = vpop.permute.xlu0 %1330
  %1332 = vrot.lane.b32.xlu0 %v1319, 96
  %v1333 = vpop.permute.xlu0 %1332
  %1336 = vrot.lane.b32.xlu0 %v1284, 64
  %v1337 = vpop.permute.xlu0 %1336
  %v1340 = vsel %vm1041, %v1322, 0
  %v1343 = vsel %vm1041, %v1323, 0
  %v1346 = vsel %vm1041, %v1324, 0
  %v1348 = vsel %vm1051, %v1333, 0
  %1350 = vmatpush.msra.mxu0 0.0
  %1351 = vmatpush.msra.mxu0 0.0
  %1352 = vmatpush.msra.mxu0 0.0
  %1353 = vmatpush.msra.mxu0 0.0
  %1354 = vmatpush.msra.mxu0 0.0
  %1355 = vmatpush.msra.mxu0 0.0
  %1356 = vmatpush.msra.mxu0 0.0
  %1357 = vmatpush.msra.mxu0 0.0
  %1358 = vmatpush.msra.mxu0 0.0
  %1359 = vmatpush.msra.mxu0 0.0
  %1360 = vmatpush.msra.mxu0 0.0
  %1361 = vmatpush.msra.mxu0 0.0
  %1362 = vmatpush.msra.mxu0 0.0
  %1363 = vmatpush.msra.mxu0 %v1348
  %1364 = vmatpush.msra.mxu0 %v1331
  %1365 = vmatpush.msra.mxu0 %v1329
  %1366 = vmatmul.f32.gmra.mxu0 %v1340
  %v1367 = vpop.f32.mrf.mxu0
  %v1368 = vadd.f32 %v1337, %v1367
  %1369 = vmatmul.f32.gmra.mxu0 %v1343
  %v1370 = vpop.f32.mrf.mxu0
  %v1371 = vadd.f32 %v1337, %v1370
  %1372 = vmatmul.f32.gmra.mxu0 %v1346
  %v1373 = vpop.f32.mrf.mxu0
  %v1374 = vadd.f32 %v1337, %v1373
  %1375 = vdwg.mxu0
  %1376 = vrot.lane.b32.xlu0 %v724, 64
  %v1377 = vpop.permute.xlu0 %1376
  %1378 = vrot.lane.b32.xlu0 %v728, 64
  %v1379 = vpop.permute.xlu0 %1378
  %1380 = vrot.lane.b32.xlu0 %v732, 64
  %v1381 = vpop.permute.xlu0 %1380
  %v1385 = vmul.f32 %v1368, %v1377
  %v1386 = vmul.f32 %v1371, %v1379
  %v1387 = vmul.f32 %v1374, %v1381
  %1388 = vrot.lane.b32.xlu0 %v724, 32
  %v1389 = vpop.permute.xlu0 %1388
  %1390 = vrot.lane.b32.xlu0 %v728, 32
  %v1391 = vpop.permute.xlu0 %1390
  %1392 = vrot.lane.b32.xlu0 %v732, 32
  %v1393 = vpop.permute.xlu0 %1392
  %v1397 = vadd.f32 %v1385, %v1389
  %v1398 = vadd.f32 %v1386, %v1391
  %v1399 = vadd.f32 %v1387, %v1393
  %v1400 = vmax.f32 %v1397, 0.0
  %v1401 = vmax.f32 %v1398, 0.0
  %v1402 = vmax.f32 %v1399, 0.0
  %v1403 = vadd.f32 %v1400, %v1313
  %v1404 = vadd.f32 %v1401, %v1316
  %v1405 = vadd.f32 %v1402, %v1319
  %s1406 = scalar_lea.vmem %s4, 3
  %v1407 = vld [vmem:[%s1406] sm:$0x1]
  %v1408 = vmul.f32 %v1403, %v945
  %v1409 = vmul.f32 %v1404, %v949
  %v1410 = vmul.f32 %v1405, %v953
  %1414 = vrot.lane.b32.xlu0 %v945, 96
  %v1415 = vpop.permute.xlu0 %1414
  %1416 = vrot.lane.b32.xlu0 %v949, 96
  %v1417 = vpop.permute.xlu0 %1416
  %1418 = vrot.lane.b32.xlu0 %v953, 96
  %v1419 = vpop.permute.xlu0 %1418
  %v1423 = vadd.f32 %v1408, %v1415
  %v1424 = vadd.f32 %v1409, %v1417
  %v1425 = vadd.f32 %v1410, %v1419
  %s1426 = scalar_lea.vmem %s2, 96
  %v1427 = vld [vmem:[%s1426] sm:$0xff]
  %v1428 = vld [vmem:[%s1426 + $0x8] sm:$0xff]
  %v1429 = vld [vmem:[%s1426 + $0x10] sm:$0xff]
  %v1430 = vld [vmem:[%s1426 + $0x18] sm:$0xff]
  %v1432 = vperm.slane %v1407, 0
  %v1435 = vsel %vm988, %v1423, 0
  %v1438 = vsel %vm988, %v1424, 0
  %v1441 = vsel %vm988, %v1425, 0
  %1443 = vmatpush.msra.mxu0 0.0
  %1444 = vmatpush.msra.mxu0 0.0
  %1445 = vmatpush.msra.mxu0 0.0
  %1446 = vmatpush.msra.mxu0 0.0
  %1447 = vmatpush.msra.mxu0 0.0
  %1448 = vmatpush.msra.mxu0 0.0
  %1449 = vmatpush.msra.mxu0 0.0
  %1450 = vmatpush.msra.mxu0 0.0
  %1451 = vmatpush.msra.mxu0 0.0
  %1452 = vmatpush.msra.mxu0 0.0
  %1453 = vmatpush.msra.mxu0 0.0
  %1454 = vmatpush.msra.mxu0 0.0
  %1455 = vmatpush.msra.mxu0 %v1430
  %1456 = vmatpush.msra.mxu0 %v1429
  %1457 = vmatpush.msra.mxu0 %v1428
  %1458 = vmatpush.msra.mxu0 %v1427
  %1459 = vmatmul.f32.gmra.mxu0 %v1435
  %v1460 = vpop.f32.mrf.mxu0
  %v1461 = vadd.f32 %v1432, %v1460
  %1462 = vmatmul.f32.gmra.mxu0 %v1438
  %v1463 = vpop.f32.mrf.mxu0
  %v1464 = vadd.f32 %v1432, %v1463
  %1465 = vmatmul.f32.gmra.mxu0 %v1441
  %v1466 = vpop.f32.mrf.mxu0
  %v1467 = vadd.f32 %v1432, %v1466
  %1468 = vdwg.mxu0
  %s1469 = scalar_lea.vmem %s3, 72
  %v1470 = vld [vmem:[%s1469] sm:$0xff]
  %v1471 = vld [vmem:[%s1469 + $0x8] sm:$0xff]
  %v1472 = vld [vmem:[%s1469 + $0x10] sm:$0xf]
  %1476 = vrot.lane.b32.xlu0 %v1461, 96
  %v1477 = vpop.permute.xlu0 %1476
  %1478 = vrot.lane.b32.xlu0 %v1464, 96
  %v1479 = vpop.permute.xlu0 %1478
  %1480 = vrot.lane.b32.xlu0 %v1467, 96
  %v1481 = vpop.permute.xlu0 %1480
  %1484 = vrot.lane.b32.xlu0 %v1432, 64
  %v1485 = vpop.permute.xlu0 %1484
  %v1488 = vsel %vm1041, %v1470, 0
  %v1491 = vsel %vm1041, %v1471, 0
  %v1494 = vsel %vm1041, %v1472, 0
  %v1496 = vsel %vm1051, %v1481, 0
  %1498 = vmatpush.msra.mxu0 0.0
  %1499 = vmatpush.msra.mxu0 0.0
  %1500 = vmatpush.msra.mxu0 0.0
  %1501 = vmatpush.msra.mxu0 0.0
  %1502 = vmatpush.msra.mxu0 0.0
  %1503 = vmatpush.msra.mxu0 0.0
  %1504 = vmatpush.msra.mxu0 0.0
  %1505 = vmatpush.msra.mxu0 0.0
  %1506 = vmatpush.msra.mxu0 0.0
  %1507 = vmatpush.msra.mxu0 0.0
  %1508 = vmatpush.msra.mxu0 0.0
  %1509 = vmatpush.msra.mxu0 0.0
  %1510 = vmatpush.msra.mxu0 0.0
  %1511 = vmatpush.msra.mxu0 %v1496
  %1512 = vmatpush.msra.mxu0 %v1479
  %1513 = vmatpush.msra.mxu0 %v1477
  %1514 = vmatmul.f32.gmra.mxu0 %v1488
  %v1515 = vpop.f32.mrf.mxu0
  %v1516 = vadd.f32 %v1485, %v1515
  %1517 = vmatmul.f32.gmra.mxu0 %v1491
  %v1518 = vpop.f32.mrf.mxu0
  %v1519 = vadd.f32 %v1485, %v1518
  %1520 = vmatmul.f32.gmra.mxu0 %v1494
  %v1521 = vpop.f32.mrf.mxu0
  %v1522 = vadd.f32 %v1485, %v1521
  %1523 = vdwg.mxu0
  %1524 = vrot.lane.b32.xlu0 %v945, 64
  %v1525 = vpop.permute.xlu0 %1524
  %1526 = vrot.lane.b32.xlu0 %v949, 64
  %v1527 = vpop.permute.xlu0 %1526
  %1528 = vrot.lane.b32.xlu0 %v953, 64
  %v1529 = vpop.permute.xlu0 %1528
  %v1533 = vmul.f32 %v1516, %v1525
  %v1534 = vmul.f32 %v1519, %v1527
  %v1535 = vmul.f32 %v1522, %v1529
  %1536 = vrot.lane.b32.xlu0 %v945, 32
  %v1537 = vpop.permute.xlu0 %1536
  %1538 = vrot.lane.b32.xlu0 %v949, 32
  %v1539 = vpop.permute.xlu0 %1538
  %1540 = vrot.lane.b32.xlu0 %v953, 32
  %v1541 = vpop.permute.xlu0 %1540
  %v1545 = vadd.f32 %v1533, %v1537
  %v1546 = vadd.f32 %v1534, %v1539
  %v1547 = vadd.f32 %v1535, %v1541
  %v1548 = vmax.f32 %v1545, 0.0
  %v1549 = vmax.f32 %v1546, 0.0
  %v1550 = vmax.f32 %v1547, 0.0
  %v1551 = vadd.f32 %v1548, %v1461
  %v1552 = vadd.f32 %v1549, %v1464
  %v1553 = vadd.f32 %v1550, %v1467
  %vm1554 = vcmask 244736
  %1555 = vst.msk [vmem:[%s5] sm:$0xff] %vm1554, %v1551
  %1556 = vst.msk [vmem:[%s5 + $0x8] sm:$0xff] %vm1554, %v1552
  %vm1557 = vcmask 240640
  %1558 = vst.msk [vmem:[%s5 + $0x10] sm:$0xf] %vm1557, %v1553
  // Predicated region
  $region22: #{progressive_pallas.1} parent=0 // pred_check
    _
  $region23: #{progressive_pallas.1} parent=0 // pred_check_branch
    %1560 = sbr.rel (0) target = $region25
  $region24: #{progressive_pallas.1} parent=0 // pred_region
    _
  $region25: #{progressive_pallas.1} parent=0 // pred_fallthru
    _
  // Predicated region
  $region26: #{progressive_pallas.1} parent=0 // pred_check
    _
  $region27: #{progressive_pallas.1} parent=0 // pred_check_branch
    %1562 = sbr.rel (0) target = $region29
  $region28: #{progressive_pallas.1} parent=0 // pred_region
    _
  $region29: #{progressive_pallas.1} parent=0 // pred_fallthru
    _

</llo_original>
